<compile_context>
chip_gen: v7x
topology: tpu7x:2x2x1
jax: 0.10.0
libtpu: 0.0.40
codegen_flags: <defaults>
</compile_context>

<pallas_src>
import math

import jax
import jax.numpy as jnp
from jax.experimental import pallas as pl

# ---------------------------------------------------------------------------
# Config (small shapes consistent with the module's forward)
# ---------------------------------------------------------------------------
BATCH = 2
IN_CH = 4          # input_dim (image channels)
SPATIAL = 16       # H = W
PATCH = 4          # ConvNeXt patchify stem kernel/stride
STATE_DIM = 32     # state_dim == repr_dim (tokenizer output dim)
NUM_LATENTS = 8    # latent graph slots
MLP_HIDDEN = 64
OUTPUT_DIM = 10    # number of logits
LOGITS_PAD = 128   # lane-dense padded logits width (sliced back in the wrapper)

NUM_TOKENS = (SPATIAL // PATCH) ** 2          # 16
PATCH_DIM = IN_CH * PATCH * PATCH             # 64
LN_EPS = 1e-5                                 # PyTorch nn.LayerNorm default


def _gelu(x):
    # tanh-approx GELU (EUP tanh path on TPU)
    # TODO(synk): PyTorch nn.GELU default is the exact erf form; tanh approx used here.
    c = math.sqrt(2.0 / math.pi)
    return 0.5 * x * (1.0 + jnp.tanh(c * (x + 0.044715 * x * x * x)))


def _layernorm(x, gamma, beta, eps=LN_EPS):
    mu = jnp.mean(x, axis=-1, keepdims=True)
    var = jnp.mean((x - mu) ** 2, axis=-1, keepdims=True)
    return (x - mu) * jax.lax.rsqrt(var + eps) * gamma + beta


# ---------------------------------------------------------------------------
# Fused kernel: tokenizer stem + latent graph block + first-slot logits
# ---------------------------------------------------------------------------
def fused_nc_kernel(patches_ref, w_patch_ref, latents_ref, wqkv_ref, wo_ref,
                    w1_ref, b1_ref, w2_ref, w_out_ref, b_out_ref, vecs_ref,
                    tok_out_ref, states_out_ref, logits_out_ref):
    B, T, L, D = BATCH, NUM_TOKENS, NUM_LATENTS, STATE_DIM

    # Packed per-feature vectors: rows =
    # [b_patch, tok_ln_g, tok_ln_b, lng_lat, lnb_lat, lng_tok, lnb_tok, lng2, lnb2, b2]
    vecs = vecs_ref[...]                                    # (10, D)
    b_patch, tok_g, tok_b = vecs[0:1], vecs[1:2], vecs[2:3]
    lng_l, lnb_l = vecs[3:4], vecs[4:5]
    lng_t, lnb_t = vecs[5:6], vecs[6:7]
    lng2, lnb2 = vecs[7:8], vecs[8:9]
    b2 = vecs[9:10]

    # ---- Stem: patchify conv as one whole-batch matmul + LayerNorm ----
    t = jnp.dot(patches_ref[...], w_patch_ref[...],
                preferred_element_type=jnp.float32) + b_patch          # (B*T, D)
    tok = _layernorm(t, tok_g, tok_b)
    tok_out_ref[...] = tok

    # ---- Latent graph: pre-LN single-head cross-attention + GELU MLP ----
    lat = latents_ref[...]                                  # (L, D)
    lat_n = _layernorm(lat, lng_l, lnb_l)
    tok_n = _layernorm(tok, lng_t, lnb_t)                   # (B*T, D)

    wqkv = wqkv_ref[...]                                    # (D, 3D)
    q = jnp.dot(lat_n, wqkv[:, 0:D],
                preferred_element_type=jnp.float32)         # (L, D)  latents -> Q
    kv = jnp.dot(tok_n, wqkv[:, D:3 * D],
                 preferred_element_type=jnp.float32)        # (B*T, 2D)  tokens -> K|V

    scale = 1.0 / math.sqrt(D)
    states_list = []
    for b in range(B):                                      # B=2: static unroll
        k_b = kv[b * T:(b + 1) * T, 0:D]                    # (T, D)
        v_b = kv[b * T:(b + 1) * T, D:2 * D]                # (T, D)
        # contract last dims directly (no explicit transpose materialization)
        scores = jax.lax.dot_general(
            q, k_b, (((1,), (1,)), ((), ())),
            preferred_element_type=jnp.float32) * scale     # (L, T)
        scores = scores - jnp.max(scores, axis=-1, keepdims=True)
        p = jnp.exp(scores)
        p = p * pl.reciprocal(jnp.sum(p, axis=-1, keepdims=True), approx=True)
        read = jnp.dot(p, v_b, preferred_element_type=jnp.float32)     # (L, D)
        states_list.append(
            lat + jnp.dot(read, wo_ref[...], preferred_element_type=jnp.float32))
    # each operand is exactly 8 sublane rows -> tile-aligned concat
    states = jnp.concatenate(states_list, axis=0)           # (B*L, D)

    # Batched MLP over all latent slots of all batch elements at once
    s_n = _layernorm(states, lng2, lnb2)
    h = _gelu(jnp.dot(s_n, w1_ref[...], preferred_element_type=jnp.float32)
              + b1_ref[...])
    states = states + jnp.dot(h, w2_ref[...],
                              preferred_element_type=jnp.float32) + b2
    states_out_ref[...] = states

    # ---- FirstSlotAsLogits: pick row b*L of each batch via a one-hot matmul ----
    col = jax.lax.broadcasted_iota(jnp.int32, (B, B * L), 1)
    row = jax.lax.broadcasted_iota(jnp.int32, (B, B * L), 0)
    sel = (col == row * L).astype(jnp.float32)              # (B, B*L)
    first = jnp.dot(sel, states, preferred_element_type=jnp.float32)   # (B, D)
    logits_out_ref[...] = (
        jnp.dot(first, w_out_ref[...], preferred_element_type=jnp.float32)
        + b_out_ref[...])                                   # (B, 128) lane-dense


def run_fused_nc(patches_flat, params):
    B, T, L, D = BATCH, NUM_TOKENS, NUM_LATENTS, STATE_DIM
    # No grid: the whole (tiny) problem is one block; all operands resident in VMEM.
    # (If BATCH grows, reintroduce a leading batch grid axis marked "parallel".)
    return pl.pallas_call(
        fused_nc_kernel,
        out_shape=(
            jax.ShapeDtypeStruct((B * T, D), jnp.float32),        # tokenized (flat)
            jax.ShapeDtypeStruct((B * L, D), jnp.float32),        # output states (flat)
            jax.ShapeDtypeStruct((B, LOGITS_PAD), jnp.float32),   # padded logits
        ),
    )(
        patches_flat,
        params["w_patch"], params["latents"], params["wqkv"], params["wo"],
        params["w1"], params["b1"], params["w2"],
        params["w_out_pad"], params["b_out_pad"], params["vecs"],
    )


# ---------------------------------------------------------------------------
# Parameter init + glue
# ---------------------------------------------------------------------------
def init_params(key):
    ks = jax.random.split(key, 9)
    n = lambda k, shape, s=0.02: (s * jax.random.normal(k, shape)).astype(jnp.float32)
    D, H, P, O = STATE_DIM, MLP_HIDDEN, PATCH_DIM, OUTPUT_DIM
    p = {}
    # tokenizer (patchify conv as matmul + LN)
    p["w_patch"] = n(ks[0], (P, D), 1.0 / math.sqrt(P))
    # latent graph
    p["latents"] = n(ks[1], (NUM_LATENTS, D), 1.0)
    wq = n(ks[2], (D, D))
    wk = n(ks[3], (D, D))
    wv = n(ks[4], (D, D))
    p["wqkv"] = jnp.concatenate([wq, wk, wv], axis=1)            # (D, 3D) fused
    p["wo"] = n(ks[5], (D, D))
    p["w1"] = n(ks[6], (D, H))
    p["b1"] = jnp.zeros((1, H), jnp.float32)
    p["w2"] = n(ks[7], (H, D))
    # output tokenizer, padded to a lane-dense 128-wide slab
    w_out = n(ks[8], (D, O), 1.0 / math.sqrt(D))
    p["w_out_pad"] = jnp.zeros((D, LOGITS_PAD), jnp.float32).at[:, :O].set(w_out)
    p["b_out_pad"] = jnp.zeros((1, LOGITS_PAD), jnp.float32)
    # packed per-feature vectors (10, D):
    # [b_patch, tok_ln_g, tok_ln_b, lng_lat, lnb_lat, lng_tok, lnb_tok, lng2, lnb2, b2]
    ones = jnp.ones((1, D), jnp.float32)
    zeros = jnp.zeros((1, D), jnp.float32)
    p["vecs"] = jnp.concatenate(
        [zeros, ones, zeros, ones, zeros, ones, zeros, ones, zeros, zeros], axis=0)
    return p


def extract_patches(x_nchw, patch):
    # layout: NCHW input -> (B, num_patches, C*patch*patch), matching
    # Conv2d(kernel=patch, stride=patch) flattened as a matmul.
    B, C, H, W = x_nchw.shape
    x = x_nchw.reshape(B, C, H // patch, patch, W // patch, patch)
    x = x.transpose(0, 2, 4, 1, 3, 5)                        # B, Hp, Wp, C, p, p
    return x.reshape(B, (H // patch) * (W // patch), C * patch * patch)


@jax.jit
def neural_compiler_forward(raw_inputs, params):
    B, T, L, D = BATCH, NUM_TOKENS, NUM_LATENTS, STATE_DIM
    patches = extract_patches(raw_inputs, PATCH).reshape(B * T, PATCH_DIM)   # glue
    tok_flat, states_flat, logits_pad = run_fused_nc(patches, params)
    return dict(
        raw_inputs=raw_inputs,
        tokenized_inputs=tok_flat.reshape(B, T, D),
        output_states=states_flat.reshape(B, L, D),
        outputs=logits_pad[:, :OUTPUT_DIM],
    )


if __name__ == "__main__":
    key = jax.random.PRNGKey(0)
    k_x, k_p = jax.random.split(key)
    x = jax.random.normal(k_x, (BATCH, IN_CH, SPATIAL, SPATIAL), dtype=jnp.float32)
    params = init_params(k_p)

    out = neural_compiler_forward(x, params)
    jax.block_until_ready(out["outputs"])

    assert out["tokenized_inputs"].shape == (BATCH, NUM_TOKENS, STATE_DIM)
    assert out["output_states"].shape == (BATCH, NUM_LATENTS, STATE_DIM)
    assert out["outputs"].shape == (BATCH, OUTPUT_DIM)
    assert bool(jnp.all(jnp.isfinite(out["outputs"])))
    print("KERNEL_OK")
</pallas_src>

<mosaic_0001>
module attributes {stable_mosaic.version = 11 : i64} {
  func.func @fused_nc_kernel(%arg0: memref<32x64xf32, #tpu.memory_space<vmem>>, %arg1: memref<64x32xf32, #tpu.memory_space<vmem>>, %arg2: memref<8x32xf32, #tpu.memory_space<vmem>>, %arg3: memref<32x96xf32, #tpu.memory_space<vmem>>, %arg4: memref<32x32xf32, #tpu.memory_space<vmem>>, %arg5: memref<32x64xf32, #tpu.memory_space<vmem>>, %arg6: memref<1x64xf32, #tpu.memory_space<vmem>>, %arg7: memref<64x32xf32, #tpu.memory_space<vmem>>, %arg8: memref<32x128xf32, #tpu.memory_space<vmem>>, %arg9: memref<1x128xf32, #tpu.memory_space<vmem>>, %arg10: memref<10x32xf32, #tpu.memory_space<vmem>>, %arg11: memref<32x32xf32, #tpu.memory_space<vmem>>, %arg12: memref<16x32xf32, #tpu.memory_space<vmem>>, %arg13: memref<2x128xf32, #tpu.memory_space<vmem>>) attributes {dimension_semantics = [], scalar_prefetch = 0 : i64, scratch_operands = 0 : i64, tpu.core_type = #tpu.core_type<tc>} {
    %c0 = arith.constant 0 : index
    %c0_0 = arith.constant 0 : index
    %0 = vector.load %arg10[%c0, %c0_0] : memref<10x32xf32, #tpu.memory_space<vmem>>, vector<10x32xf32>
    %1 = vector.extract_strided_slice %0 {offsets = [0, 0], sizes = [1, 32], strides = [1, 1]} : vector<10x32xf32> to vector<1x32xf32>
    %2 = vector.extract_strided_slice %0 {offsets = [1, 0], sizes = [1, 32], strides = [1, 1]} : vector<10x32xf32> to vector<1x32xf32>
    %3 = vector.extract_strided_slice %0 {offsets = [2, 0], sizes = [1, 32], strides = [1, 1]} : vector<10x32xf32> to vector<1x32xf32>
    %4 = vector.extract_strided_slice %0 {offsets = [3, 0], sizes = [1, 32], strides = [1, 1]} : vector<10x32xf32> to vector<1x32xf32>
    %5 = vector.extract_strided_slice %0 {offsets = [4, 0], sizes = [1, 32], strides = [1, 1]} : vector<10x32xf32> to vector<1x32xf32>
    %6 = vector.extract_strided_slice %0 {offsets = [5, 0], sizes = [1, 32], strides = [1, 1]} : vector<10x32xf32> to vector<1x32xf32>
    %7 = vector.extract_strided_slice %0 {offsets = [6, 0], sizes = [1, 32], strides = [1, 1]} : vector<10x32xf32> to vector<1x32xf32>
    %8 = vector.extract_strided_slice %0 {offsets = [7, 0], sizes = [1, 32], strides = [1, 1]} : vector<10x32xf32> to vector<1x32xf32>
    %9 = vector.extract_strided_slice %0 {offsets = [8, 0], sizes = [1, 32], strides = [1, 1]} : vector<10x32xf32> to vector<1x32xf32>
    %10 = vector.extract_strided_slice %0 {offsets = [9, 0], sizes = [1, 32], strides = [1, 1]} : vector<10x32xf32> to vector<1x32xf32>
    %c0_1 = arith.constant 0 : index
    %c0_2 = arith.constant 0 : index
    %11 = vector.load %arg0[%c0_1, %c0_2] : memref<32x64xf32, #tpu.memory_space<vmem>>, vector<32x64xf32>
    %c0_3 = arith.constant 0 : index
    %c0_4 = arith.constant 0 : index
    %12 = vector.load %arg1[%c0_3, %c0_4] : memref<64x32xf32, #tpu.memory_space<vmem>>, vector<64x32xf32>
    %cst = arith.constant dense<0.000000e+00> : vector<32x32xf32>
    %13 = tpu.matmul %11, %12, %cst {dimension_numbers = #tpu.dot_dimension_numbers<[1], [0], [0], [1], [0, 0, 1, 1], [], []>} : vector<32x64xf32>, vector<64x32xf32>, vector<32x32xf32> -> vector<32x32xf32>
    %14 = vector.broadcast %1 : vector<1x32xf32> to vector<32x32xf32>
    %15 = arith.addf %13, %14 : vector<32x32xf32>
    %cst_5 = arith.constant dense<0.000000e+00> : vector<32xf32>
    %16 = vector.multi_reduction <add>, %15, %cst_5 [1] : vector<32x32xf32> to vector<32xf32>
    %17 = vector.shape_cast %16 : vector<32xf32> to vector<32x1xf32>
    %cst_6 = arith.constant 3.200000e+01 : f32
    %18 = vector.broadcast %cst_6 : f32 to vector<32x1xf32>
    %19 = arith.divf %17, %18 : vector<32x1xf32>
    %20 = vector.broadcast %19 : vector<32x1xf32> to vector<32x32xf32>
    %21 = arith.subf %15, %20 : vector<32x32xf32>
    %22 = arith.mulf %21, %21 : vector<32x32xf32>
    %cst_7 = arith.constant dense<0.000000e+00> : vector<32xf32>
    %23 = vector.multi_reduction <add>, %22, %cst_7 [1] : vector<32x32xf32> to vector<32xf32>
    %24 = vector.shape_cast %23 : vector<32xf32> to vector<32x1xf32>
    %cst_8 = arith.constant 3.200000e+01 : f32
    %25 = vector.broadcast %cst_8 : f32 to vector<32x1xf32>
    %26 = arith.divf %24, %25 : vector<32x1xf32>
    %27 = vector.broadcast %19 : vector<32x1xf32> to vector<32x32xf32>
    %28 = arith.subf %15, %27 : vector<32x32xf32>
    %cst_9 = arith.constant 9.99999974E-6 : f32
    %29 = vector.broadcast %cst_9 : f32 to vector<32x1xf32>
    %30 = arith.addf %26, %29 : vector<32x1xf32>
    %31 = math.rsqrt %30 : vector<32x1xf32>
    %32 = vector.broadcast %31 : vector<32x1xf32> to vector<32x32xf32>
    %33 = arith.mulf %28, %32 : vector<32x32xf32>
    %34 = vector.broadcast %2 : vector<1x32xf32> to vector<32x32xf32>
    %35 = arith.mulf %33, %34 : vector<32x32xf32>
    %36 = vector.broadcast %3 : vector<1x32xf32> to vector<32x32xf32>
    %37 = arith.addf %35, %36 : vector<32x32xf32>
    %c0_10 = arith.constant 0 : index
    %c0_11 = arith.constant 0 : index
    %38 = vector.load %arg11[%c0_10, %c0_11] : memref<32x32xf32, #tpu.memory_space<vmem>>, vector<32x32xf32>
    tpu.vector_store %arg11[%c0_10, %c0_11], %37 {strides = array<i32>} : memref<32x32xf32, #tpu.memory_space<vmem>>, vector<32x32xf32>,
    %c0_12 = arith.constant 0 : index
    %c0_13 = arith.constant 0 : index
    %39 = vector.load %arg2[%c0_12, %c0_13] : memref<8x32xf32, #tpu.memory_space<vmem>>, vector<8x32xf32>
    %cst_14 = arith.constant dense<0.000000e+00> : vector<8xf32>
    %40 = vector.multi_reduction <add>, %39, %cst_14 [1] : vector<8x32xf32> to vector<8xf32>
    %41 = vector.shape_cast %40 : vector<8xf32> to vector<8x1xf32>
    %cst_15 = arith.constant 3.200000e+01 : f32
    %42 = vector.broadcast %cst_15 : f32 to vector<8x1xf32>
    %43 = arith.divf %41, %42 : vector<8x1xf32>
    %44 = vector.broadcast %43 : vector<8x1xf32> to vector<8x32xf32>
    %45 = arith.subf %39, %44 : vector<8x32xf32>
    %46 = arith.mulf %45, %45 : vector<8x32xf32>
    %cst_16 = arith.constant dense<0.000000e+00> : vector<8xf32>
    %47 = vector.multi_reduction <add>, %46, %cst_16 [1] : vector<8x32xf32> to vector<8xf32>
    %48 = vector.shape_cast %47 : vector<8xf32> to vector<8x1xf32>
    %cst_17 = arith.constant 3.200000e+01 : f32
    %49 = vector.broadcast %cst_17 : f32 to vector<8x1xf32>
    %50 = arith.divf %48, %49 : vector<8x1xf32>
    %51 = vector.broadcast %43 : vector<8x1xf32> to vector<8x32xf32>
    %52 = arith.subf %39, %51 : vector<8x32xf32>
    %cst_18 = arith.constant 9.99999974E-6 : f32
    %53 = vector.broadcast %cst_18 : f32 to vector<8x1xf32>
    %54 = arith.addf %50, %53 : vector<8x1xf32>
    %55 = math.rsqrt %54 : vector<8x1xf32>
    %56 = vector.broadcast %55 : vector<8x1xf32> to vector<8x32xf32>
    %57 = arith.mulf %52, %56 : vector<8x32xf32>
    %58 = vector.broadcast %4 : vector<1x32xf32> to vector<8x32xf32>
    %59 = arith.mulf %57, %58 : vector<8x32xf32>
    %60 = vector.broadcast %5 : vector<1x32xf32> to vector<8x32xf32>
    %61 = arith.addf %59, %60 : vector<8x32xf32>
    %cst_19 = arith.constant dense<0.000000e+00> : vector<32xf32>
    %62 = vector.multi_reduction <add>, %37, %cst_19 [1] : vector<32x32xf32> to vector<32xf32>
    %63 = vector.shape_cast %62 : vector<32xf32> to vector<32x1xf32>
    %cst_20 = arith.constant 3.200000e+01 : f32
    %64 = vector.broadcast %cst_20 : f32 to vector<32x1xf32>
    %65 = arith.divf %63, %64 : vector<32x1xf32>
    %66 = vector.broadcast %65 : vector<32x1xf32> to vector<32x32xf32>
    %67 = arith.subf %37, %66 : vector<32x32xf32>
    %68 = arith.mulf %67, %67 : vector<32x32xf32>
    %cst_21 = arith.constant dense<0.000000e+00> : vector<32xf32>
    %69 = vector.multi_reduction <add>, %68, %cst_21 [1] : vector<32x32xf32> to vector<32xf32>
    %70 = vector.shape_cast %69 : vector<32xf32> to vector<32x1xf32>
    %cst_22 = arith.constant 3.200000e+01 : f32
    %71 = vector.broadcast %cst_22 : f32 to vector<32x1xf32>
    %72 = arith.divf %70, %71 : vector<32x1xf32>
    %73 = vector.broadcast %65 : vector<32x1xf32> to vector<32x32xf32>
    %74 = arith.subf %37, %73 : vector<32x32xf32>
    %cst_23 = arith.constant 9.99999974E-6 : f32
    %75 = vector.broadcast %cst_23 : f32 to vector<32x1xf32>
    %76 = arith.addf %72, %75 : vector<32x1xf32>
    %77 = math.rsqrt %76 : vector<32x1xf32>
    %78 = vector.broadcast %77 : vector<32x1xf32> to vector<32x32xf32>
    %79 = arith.mulf %74, %78 : vector<32x32xf32>
    %80 = vector.broadcast %6 : vector<1x32xf32> to vector<32x32xf32>
    %81 = arith.mulf %79, %80 : vector<32x32xf32>
    %82 = vector.broadcast %7 : vector<1x32xf32> to vector<32x32xf32>
    %83 = arith.addf %81, %82 : vector<32x32xf32>
    %c0_24 = arith.constant 0 : index
    %c0_25 = arith.constant 0 : index
    %84 = vector.load %arg3[%c0_24, %c0_25] : memref<32x96xf32, #tpu.memory_space<vmem>>, vector<32x96xf32>
    %85 = vector.extract_strided_slice %84 {offsets = [0, 0], sizes = [32, 32], strides = [1, 1]} : vector<32x96xf32> to vector<32x32xf32>
    %cst_26 = arith.constant dense<0.000000e+00> : vector<8x32xf32>
    %86 = tpu.matmul %61, %85, %cst_26 {dimension_numbers = #tpu.dot_dimension_numbers<[1], [0], [0], [1], [0, 0, 1, 1], [], []>} : vector<8x32xf32>, vector<32x32xf32>, vector<8x32xf32> -> vector<8x32xf32>
    %87 = vector.extract_strided_slice %84 {offsets = [0, 32], sizes = [32, 64], strides = [1, 1]} : vector<32x96xf32> to vector<32x64xf32>
    %cst_27 = arith.constant dense<0.000000e+00> : vector<32x64xf32>
    %88 = tpu.matmul %83, %87, %cst_27 {dimension_numbers = #tpu.dot_dimension_numbers<[1], [0], [0], [1], [0, 0, 1, 1], [], []>} : vector<32x32xf32>, vector<32x64xf32>, vector<32x64xf32> -> vector<32x64xf32>
    %89 = vector.extract_strided_slice %88 {offsets = [0, 0], sizes = [16, 32], strides = [1, 1]} : vector<32x64xf32> to vector<16x32xf32>
    %90 = vector.extract_strided_slice %88 {offsets = [0, 32], sizes = [16, 32], strides = [1, 1]} : vector<32x64xf32> to vector<16x32xf32>
    %cst_28 = arith.constant dense<0.000000e+00> : vector<8x16xf32>
    %91 = tpu.matmul %86, %89, %cst_28 {dimension_numbers = #tpu.dot_dimension_numbers<[1], [1], [0], [0], [0, 0, 1, 0], [], []>} : vector<8x32xf32>, vector<16x32xf32>, vector<8x16xf32> -> vector<8x16xf32>
    %cst_29 = arith.constant 0.176776692 : f32
    %92 = vector.broadcast %cst_29 : f32 to vector<8x16xf32>
    %93 = arith.mulf %91, %92 : vector<8x16xf32>
    %cst_30 = arith.constant dense<0xFF800000> : vector<8xf32>
    %94 = vector.multi_reduction <maximumf>, %93, %cst_30 [1] : vector<8x16xf32> to vector<8xf32>
    %95 = vector.shape_cast %94 : vector<8xf32> to vector<8x1xf32>
    %96 = vector.broadcast %95 : vector<8x1xf32> to vector<8x16xf32>
    %97 = arith.subf %93, %96 : vector<8x16xf32>
    %98 = math.exp %97 : vector<8x16xf32>
    %cst_31 = arith.constant dense<0.000000e+00> : vector<8xf32>
    %99 = vector.multi_reduction <add>, %98, %cst_31 [1] : vector<8x16xf32> to vector<8xf32>
    %100 = vector.shape_cast %99 : vector<8xf32> to vector<8x1xf32>
    %101 = tpu.reciprocal %100 {approx = true} : vector<8x1xf32> -> vector<8x1xf32>
    %102 = vector.broadcast %101 : vector<8x1xf32> to vector<8x16xf32>
    %103 = arith.mulf %98, %102 : vector<8x16xf32>
    %cst_32 = arith.constant dense<0.000000e+00> : vector<8x32xf32>
    %104 = tpu.matmul %103, %90, %cst_32 {dimension_numbers = #tpu.dot_dimension_numbers<[1], [0], [0], [1], [0, 0, 1, 1], [], []>} : vector<8x16xf32>, vector<16x32xf32>, vector<8x32xf32> -> vector<8x32xf32>
    %c0_33 = arith.constant 0 : index
    %c0_34 = arith.constant 0 : index
    %105 = vector.load %arg4[%c0_33, %c0_34] : memref<32x32xf32, #tpu.memory_space<vmem>>, vector<32x32xf32>
    %cst_35 = arith.constant dense<0.000000e+00> : vector<8x32xf32>
    %106 = tpu.matmul %104, %105, %cst_35 {dimension_numbers = #tpu.dot_dimension_numbers<[1], [0], [0], [1], [0, 0, 1, 1], [], []>} : vector<8x32xf32>, vector<32x32xf32>, vector<8x32xf32> -> vector<8x32xf32>
    %107 = arith.addf %39, %106 : vector<8x32xf32>
    %108 = vector.extract_strided_slice %88 {offsets = [16, 0], sizes = [16, 32], strides = [1, 1]} : vector<32x64xf32> to vector<16x32xf32>
    %109 = vector.extract_strided_slice %88 {offsets = [16, 32], sizes = [16, 32], strides = [1, 1]} : vector<32x64xf32> to vector<16x32xf32>
    %cst_36 = arith.constant dense<0.000000e+00> : vector<8x16xf32>
    %110 = tpu.matmul %86, %108, %cst_36 {dimension_numbers = #tpu.dot_dimension_numbers<[1], [1], [0], [0], [0, 0, 1, 0], [], []>} : vector<8x32xf32>, vector<16x32xf32>, vector<8x16xf32> -> vector<8x16xf32>
    %cst_37 = arith.constant 0.176776692 : f32
    %111 = vector.broadcast %cst_37 : f32 to vector<8x16xf32>
    %112 = arith.mulf %110, %111 : vector<8x16xf32>
    %cst_38 = arith.constant dense<0xFF800000> : vector<8xf32>
    %113 = vector.multi_reduction <maximumf>, %112, %cst_38 [1] : vector<8x16xf32> to vector<8xf32>
    %114 = vector.shape_cast %113 : vector<8xf32> to vector<8x1xf32>
    %115 = vector.broadcast %114 : vector<8x1xf32> to vector<8x16xf32>
    %116 = arith.subf %112, %115 : vector<8x16xf32>
    %117 = math.exp %116 : vector<8x16xf32>
    %cst_39 = arith.constant dense<0.000000e+00> : vector<8xf32>
    %118 = vector.multi_reduction <add>, %117, %cst_39 [1] : vector<8x16xf32> to vector<8xf32>
    %119 = vector.shape_cast %118 : vector<8xf32> to vector<8x1xf32>
    %120 = tpu.reciprocal %119 {approx = true} : vector<8x1xf32> -> vector<8x1xf32>
    %121 = vector.broadcast %120 : vector<8x1xf32> to vector<8x16xf32>
    %122 = arith.mulf %117, %121 : vector<8x16xf32>
    %cst_40 = arith.constant dense<0.000000e+00> : vector<8x32xf32>
    %123 = tpu.matmul %122, %109, %cst_40 {dimension_numbers = #tpu.dot_dimension_numbers<[1], [0], [0], [1], [0, 0, 1, 1], [], []>} : vector<8x16xf32>, vector<16x32xf32>, vector<8x32xf32> -> vector<8x32xf32>
    %c0_41 = arith.constant 0 : index
    %c0_42 = arith.constant 0 : index
    %124 = vector.load %arg4[%c0_41, %c0_42] : memref<32x32xf32, #tpu.memory_space<vmem>>, vector<32x32xf32>
    %cst_43 = arith.constant dense<0.000000e+00> : vector<8x32xf32>
    %125 = tpu.matmul %123, %124, %cst_43 {dimension_numbers = #tpu.dot_dimension_numbers<[1], [0], [0], [1], [0, 0, 1, 1], [], []>} : vector<8x32xf32>, vector<32x32xf32>, vector<8x32xf32> -> vector<8x32xf32>
    %126 = arith.addf %39, %125 : vector<8x32xf32>
    %127 = tpu.concatenate %107, %126 in 0 : vector<8x32xf32>, vector<8x32xf32> -> vector<16x32xf32>
    %cst_44 = arith.constant dense<0.000000e+00> : vector<16xf32>
    %128 = vector.multi_reduction <add>, %127, %cst_44 [1] : vector<16x32xf32> to vector<16xf32>
    %129 = vector.shape_cast %128 : vector<16xf32> to vector<16x1xf32>
    %cst_45 = arith.constant 3.200000e+01 : f32
    %130 = vector.broadcast %cst_45 : f32 to vector<16x1xf32>
    %131 = arith.divf %129, %130 : vector<16x1xf32>
    %132 = vector.broadcast %131 : vector<16x1xf32> to vector<16x32xf32>
    %133 = arith.subf %127, %132 : vector<16x32xf32>
    %134 = arith.mulf %133, %133 : vector<16x32xf32>
    %cst_46 = arith.constant dense<0.000000e+00> : vector<16xf32>
    %135 = vector.multi_reduction <add>, %134, %cst_46 [1] : vector<16x32xf32> to vector<16xf32>
    %136 = vector.shape_cast %135 : vector<16xf32> to vector<16x1xf32>
    %cst_47 = arith.constant 3.200000e+01 : f32
    %137 = vector.broadcast %cst_47 : f32 to vector<16x1xf32>
    %138 = arith.divf %136, %137 : vector<16x1xf32>
    %139 = vector.broadcast %131 : vector<16x1xf32> to vector<16x32xf32>
    %140 = arith.subf %127, %139 : vector<16x32xf32>
    %cst_48 = arith.constant 9.99999974E-6 : f32
    %141 = vector.broadcast %cst_48 : f32 to vector<16x1xf32>
    %142 = arith.addf %138, %141 : vector<16x1xf32>
    %143 = math.rsqrt %142 : vector<16x1xf32>
    %144 = vector.broadcast %143 : vector<16x1xf32> to vector<16x32xf32>
    %145 = arith.mulf %140, %144 : vector<16x32xf32>
    %146 = vector.broadcast %8 : vector<1x32xf32> to vector<16x32xf32>
    %147 = arith.mulf %145, %146 : vector<16x32xf32>
    %148 = vector.broadcast %9 : vector<1x32xf32> to vector<16x32xf32>
    %149 = arith.addf %147, %148 : vector<16x32xf32>
    %c0_49 = arith.constant 0 : index
    %c0_50 = arith.constant 0 : index
    %150 = vector.load %arg5[%c0_49, %c0_50] : memref<32x64xf32, #tpu.memory_space<vmem>>, vector<32x64xf32>
    %cst_51 = arith.constant dense<0.000000e+00> : vector<16x64xf32>
    %151 = tpu.matmul %149, %150, %cst_51 {dimension_numbers = #tpu.dot_dimension_numbers<[1], [0], [0], [1], [0, 0, 1, 1], [], []>} : vector<16x32xf32>, vector<32x64xf32>, vector<16x64xf32> -> vector<16x64xf32>
    %c0_52 = arith.constant 0 : index
    %c0_53 = arith.constant 0 : index
    %152 = vector.load %arg6[%c0_52, %c0_53] : memref<1x64xf32, #tpu.memory_space<vmem>>, vector<1x64xf32>
    %153 = vector.broadcast %152 : vector<1x64xf32> to vector<16x64xf32>
    %154 = arith.addf %151, %153 : vector<16x64xf32>
    %cst_54 = arith.constant 5.000000e-01 : f32
    %155 = vector.broadcast %cst_54 : f32 to vector<16x64xf32>
    %156 = arith.mulf %155, %154 : vector<16x64xf32>
    %cst_55 = arith.constant 4.471500e-02 : f32
    %157 = vector.broadcast %cst_55 : f32 to vector<16x64xf32>
    %158 = arith.mulf %157, %154 : vector<16x64xf32>
    %159 = arith.mulf %158, %154 : vector<16x64xf32>
    %160 = arith.mulf %159, %154 : vector<16x64xf32>
    %161 = arith.addf %154, %160 : vector<16x64xf32>
    %cst_56 = arith.constant 0.797884583 : f32
    %162 = vector.broadcast %cst_56 : f32 to vector<16x64xf32>
    %163 = arith.mulf %162, %161 : vector<16x64xf32>
    %164 = math.tanh %163 : vector<16x64xf32>
    %cst_57 = arith.constant 1.000000e+00 : f32
    %165 = vector.broadcast %cst_57 : f32 to vector<16x64xf32>
    %166 = arith.addf %165, %164 : vector<16x64xf32>
    %167 = arith.mulf %156, %166 : vector<16x64xf32>
    %c0_58 = arith.constant 0 : index
    %c0_59 = arith.constant 0 : index
    %168 = vector.load %arg7[%c0_58, %c0_59] : memref<64x32xf32, #tpu.memory_space<vmem>>, vector<64x32xf32>
    %cst_60 = arith.constant dense<0.000000e+00> : vector<16x32xf32>
    %169 = tpu.matmul %167, %168, %cst_60 {dimension_numbers = #tpu.dot_dimension_numbers<[1], [0], [0], [1], [0, 0, 1, 1], [], []>} : vector<16x64xf32>, vector<64x32xf32>, vector<16x32xf32> -> vector<16x32xf32>
    %170 = arith.addf %127, %169 : vector<16x32xf32>
    %171 = vector.broadcast %10 : vector<1x32xf32> to vector<16x32xf32>
    %172 = arith.addf %170, %171 : vector<16x32xf32>
    %c0_61 = arith.constant 0 : index
    %c0_62 = arith.constant 0 : index
    %173 = vector.load %arg12[%c0_61, %c0_62] : memref<16x32xf32, #tpu.memory_space<vmem>>, vector<16x32xf32>
    tpu.vector_store %arg12[%c0_61, %c0_62], %172 {strides = array<i32>} : memref<16x32xf32, #tpu.memory_space<vmem>>, vector<16x32xf32>,
    %174 = tpu.iota {dimensions = array<i32: 1>} : vector<2x16xi32>
    %175 = tpu.iota {dimensions = array<i32: 0>} : vector<2x16xi32>
    %c8_i32 = arith.constant 8 : i32
    %176 = vector.broadcast %c8_i32 : i32 to vector<2x16xi32>
    %177 = arith.muli %175, %176 : vector<2x16xi32>
    %178 = arith.cmpi eq, %174, %177 : vector<2x16xi32>
    %179 = arith.extui %178 : vector<2x16xi1> to vector<2x16xi32>
    %180 = arith.sitofp %179 : vector<2x16xi32> to vector<2x16xf32>
    %cst_63 = arith.constant dense<0.000000e+00> : vector<2x32xf32>
    %181 = tpu.matmul %180, %172, %cst_63 {dimension_numbers = #tpu.dot_dimension_numbers<[1], [0], [0], [1], [0, 0, 1, 1], [], []>} : vector<2x16xf32>, vector<16x32xf32>, vector<2x32xf32> -> vector<2x32xf32>
    %c0_64 = arith.constant 0 : index
    %c0_65 = arith.constant 0 : index
    %182 = vector.load %arg8[%c0_64, %c0_65] : memref<32x128xf32, #tpu.memory_space<vmem>>, vector<32x128xf32>
    %cst_66 = arith.constant dense<0.000000e+00> : vector<2x128xf32>
    %183 = tpu.matmul %181, %182, %cst_66 {dimension_numbers = #tpu.dot_dimension_numbers<[1], [0], [0], [1], [0, 0, 1, 1], [], []>} : vector<2x32xf32>, vector<32x128xf32>, vector<2x128xf32> -> vector<2x128xf32>
    %c0_67 = arith.constant 0 : index
    %c0_68 = arith.constant 0 : index
    %184 = vector.load %arg9[%c0_67, %c0_68] : memref<1x128xf32, #tpu.memory_space<vmem>>, vector<1x128xf32>
    %185 = vector.broadcast %184 : vector<1x128xf32> to vector<2x128xf32>
    %186 = arith.addf %183, %185 : vector<2x128xf32>
    %c0_69 = arith.constant 0 : index
    %c0_70 = arith.constant 0 : index
    %187 = vector.load %arg13[%c0_69, %c0_70] : memref<2x128xf32, #tpu.memory_space<vmem>>, vector<2x128xf32>
    tpu.vector_store %arg13[%c0_69, %c0_70], %186 {strides = array<i32>} : memref<2x128xf32, #tpu.memory_space<vmem>>, vector<2x128xf32>,
    return
  }
}

</mosaic_0001>

<llo_original>
// kernel: neural_compiler_forward.1
$region0: #{neural_compiler_forward.1}
  #allocation0 [shape = 'u32[]', space=smem, size = 0x4, offset = 0x4, fixed_abs, tag = 'smem constant byte address 0x4 - core index']
  #allocation1 [shape = 'u32[144,128]{1,0:T(1,128)}', space=vmem, size = 0x12000, scoped, tag = 'internal scratch']
  %s0 = inlined_call_operand.vmem [shape: f32[32,64], index: 0, kind: input, shape index: {}]
  %s1 = inlined_call_operand.vmem [shape: f32[64,32], index: 1, kind: input, shape index: {}]
  %s2 = inlined_call_operand.vmem [shape: f32[8,32], index: 2, kind: input, shape index: {}]
  %s3 = inlined_call_operand.vmem [shape: f32[32,96], index: 3, kind: input, shape index: {}]
  %s4 = inlined_call_operand.vmem [shape: f32[32,32], index: 4, kind: input, shape index: {}]
  %s5 = inlined_call_operand.vmem [shape: f32[32,64], index: 5, kind: input, shape index: {}]
  %s6 = inlined_call_operand.vmem [shape: f32[1,64], index: 6, kind: input, shape index: {}]
  %s7 = inlined_call_operand.vmem [shape: f32[64,32], index: 7, kind: input, shape index: {}]
  %s8 = inlined_call_operand.vmem [shape: f32[32,128], index: 8, kind: input, shape index: {}]
  %s9 = inlined_call_operand.vmem [shape: f32[1,128], index: 9, kind: input, shape index: {}]
  %s10 = inlined_call_operand.vmem [shape: f32[10,32], index: 10, kind: input, shape index: {}]
  %s11 = inlined_call_operand.hbm [shape: f32[32,32], index: 11, kind: output, shape index: {0}]
  %s12 = inlined_call_operand.hbm [shape: f32[16,32], index: 12, kind: output, shape index: {1}]
  %s13 = inlined_call_operand.hbm [shape: f32[2,128], index: 13, kind: output, shape index: {2}]
  %14 = xla_tuple %s11, %s12, %s13
  %s15 = sld [smem:[#allocation0]]
  $region70: #{neural_compiler_forward.1} parent=0
    _
  %s17 = ssub.s32 1, %s15
  %s18 = scalar_select 0, %s17, %s15
  $region1: #{neural_compiler_forward.1} parent=0
    #allocation2 [shape = 'u8[16384]{0}', space=vmem, size = 0x4000, scoped, tag = 'output window, operand 0, single buffered']
    #allocation3 [shape = 's32[1]{0}', space=sflag, size = 0x4, scoped, tag = 'scoped memory for neural_compiler_forward.1']
    #allocation4 [shape = 'u8[8192]{0}', space=vmem, size = 0x2000, scoped, tag = 'output window, operand 1, single buffered']
    #allocation5 [shape = 's32[1]{0}', space=sflag, size = 0x4, scoped, tag = 'scoped memory for neural_compiler_forward.1']
    #allocation6 [shape = 'u8[1024]{0}', space=vmem, size = 0x400, scoped, tag = 'output window, operand 2, single buffered']
    %19 = vsyncpa [#allocation3], 0
    %20 = vsyncpa [#allocation5], 0
    // Predicated region
    $region2: #{neural_compiler_forward.1} parent=1 // pred_check
      _
    $region3: #{neural_compiler_forward.1} parent=1 // pred_check_branch
      %22 = sbr.rel (0) target = $region5
    $region4: #{neural_compiler_forward.1} parent=1 // pred_region
      _
    $region5: #{neural_compiler_forward.1} parent=1 // pred_fallthru
      _
    // Predicated region
    $region6: #{neural_compiler_forward.1} parent=1 // pred_check
      _
    $region7: #{neural_compiler_forward.1} parent=1 // pred_check_branch
      %24 = sbr.rel (0) target = $region9
    $region8: #{neural_compiler_forward.1} parent=1 // pred_region
      _
    $region9: #{neural_compiler_forward.1} parent=1 // pred_fallthru
      _
    // Predicated region
    $region10: #{neural_compiler_forward.1} parent=1 // pred_check
      _
    $region11: #{neural_compiler_forward.1} parent=1 // pred_check_branch
      %26 = sbr.rel (0) target = $region13
    $region12: #{neural_compiler_forward.1} parent=1 // pred_region
      _
    $region13: #{neural_compiler_forward.1} parent=1 // pred_fallthru
      _
    // Predicated region
    $region14: #{neural_compiler_forward.1} parent=1 // pred_check
      _
    $region15: #{neural_compiler_forward.1} parent=1 // pred_check_branch
      %28 = sbr.rel (0) target = $region17
    $region16: #{neural_compiler_forward.1} parent=1 // pred_region
      _
    $region17: #{neural_compiler_forward.1} parent=1 // pred_fallthru
      _
    // Predicated region
    $region18: #{neural_compiler_forward.1} parent=1 // pred_check
      _
    $region19: #{neural_compiler_forward.1} parent=1 // pred_check_branch
      %30 = sbr.rel (0) target = $region21
    $region20: #{neural_compiler_forward.1} parent=1 // pred_region
      _
    $region21: #{neural_compiler_forward.1} parent=1 // pred_fallthru
      _
    // Predicated region
    $region22: #{neural_compiler_forward.1} parent=1 // pred_check
      _
    $region23: #{neural_compiler_forward.1} parent=1 // pred_check_branch
      %32 = sbr.rel (0) target = $region25
    $region24: #{neural_compiler_forward.1} parent=1 // pred_region
      _
    $region25: #{neural_compiler_forward.1} parent=1 // pred_fallthru
      _
    // Predicated region
    $region26: #{neural_compiler_forward.1} parent=1 // pred_check
      _
    $region27: #{neural_compiler_forward.1} parent=1 // pred_check_branch
      %34 = sbr.rel (0) target = $region29
    $region28: #{neural_compiler_forward.1} parent=1 // pred_region
      _
    $region29: #{neural_compiler_forward.1} parent=1 // pred_fallthru
      _
    // Predicated region
    $region30: #{neural_compiler_forward.1} parent=1 // pred_check
      _
    $region31: #{neural_compiler_forward.1} parent=1 // pred_check_branch
      %36 = sbr.rel (0) target = $region33
    $region32: #{neural_compiler_forward.1} parent=1 // pred_region
      _
    $region33: #{neural_compiler_forward.1} parent=1 // pred_fallthru
      _
    // Predicated region
    $region34: #{neural_compiler_forward.1} parent=1 // pred_check
      _
    $region35: #{neural_compiler_forward.1} parent=1 // pred_check_branch
      %38 = sbr.rel (0) target = $region37
    $region36: #{neural_compiler_forward.1} parent=1 // pred_region
      _
    $region37: #{neural_compiler_forward.1} parent=1 // pred_fallthru
      _
    // Predicated region
    $region38: #{neural_compiler_forward.1} parent=1 // pred_check
      _
    $region39: #{neural_compiler_forward.1} parent=1 // pred_check_branch
      %40 = sbr.rel (0) target = $region41
    $region40: #{neural_compiler_forward.1} parent=1 // pred_region
      _
    $region41: #{neural_compiler_forward.1} parent=1 // pred_fallthru
      _
    // Predicated region
    $region42: #{neural_compiler_forward.1} parent=1 // pred_check
      _
    $region43: #{neural_compiler_forward.1} parent=1 // pred_check_branch
      %42 = sbr.rel (0) target = $region45
    $region44: #{neural_compiler_forward.1} parent=1 // pred_region
      _
    $region45: #{neural_compiler_forward.1} parent=1 // pred_fallthru
      _
    %v43 = vld [vmem:[%s10] sm:$0xff]
    %v44 = vld [vmem:[%s10 + $0x8] sm:$0x3]
    %v45 = vld [vmem:[%s0] sm:$0xff]
    %v46 = vld [vmem:[%s0 + $0x8] sm:$0xff]
    %v47 = vld [vmem:[%s0 + $0x10] sm:$0xff]
    %v48 = vld [vmem:[%s0 + $0x18] sm:$0xff]
    %v49 = vld [vmem:[%s1] sm:$0xff]
    %v50 = vld [vmem:[%s1 + $0x8] sm:$0xff]
    %v51 = vld [vmem:[%s1 + $0x10] sm:$0xff]
    %v52 = vld [vmem:[%s1 + $0x18] sm:$0xff]
    %v53 = vld [vmem:[%s1 + $0x20] sm:$0xff]
    %v54 = vld [vmem:[%s1 + $0x28] sm:$0xff]
    %v55 = vld [vmem:[%s1 + $0x30] sm:$0xff]
    %v56 = vld [vmem:[%s1 + $0x38] sm:$0xff]
    %v57 = vlaneseq
    %v58 = vshrl.u32 %v57, 7
    %v59 = vsub.s32 0, %v58
    %v60 = vrot.slane %v43, %v59
    %vm61 = vcmask 523264
    %v63 = vsel %vm61, %v45, 0
    %v66 = vsel %vm61, %v46, 0
    %v69 = vsel %vm61, %v47, 0
    %v72 = vsel %vm61, %v48, 0
    %74 = vmatprep.subr.mxu0 0.0
    %75 = vmatpush1.msra.mxu0 %v49
    %76 = vmatprep.subr.mxu0 0.0
    %77 = vmatpush1.msra.mxu0 %v50
    %78 = vmatprep.subr.mxu0 0.0
    %79 = vmatpush1.msra.mxu0 %v51
    %80 = vmatprep.subr.mxu0 0.0
    %81 = vmatpush1.msra.mxu0 %v52
    %82 = vmatprep.subr.mxu0 0.0
    %83 = vmatpush1.msra.mxu0 %v53
    %84 = vmatprep.subr.mxu0 0.0
    %85 = vmatpush1.msra.mxu0 %v54
    %86 = vmatprep.subr.mxu0 0.0
    %87 = vmatpush1.msra.mxu0 %v55
    %88 = vmatprep.subr.mxu0 0.0
    %89 = vmatpush1.msra.mxu0 %v56
    %90 = vmatprep.subr.mxu0 0.0
    %91 = vmatpush1.msra.mxu0 0.0
    %92 = vmatprep.subr.mxu0 0.0
    %93 = vmatpush1.msra.mxu0 0.0
    %94 = vmatprep.subr.mxu0 0.0
    %95 = vmatpush1.msra.mxu0 0.0
    %96 = vmatprep.subr.mxu0 0.0
    %97 = vmatpush1.msra.mxu0 0.0
    %98 = vmatprep.subr.mxu0 0.0
    %99 = vmatpush1.msra.mxu0 0.0
    %100 = vmatprep.subr.mxu0 0.0
    %101 = vmatpush1.msra.mxu0 0.0
    %102 = vmatprep.subr.mxu0 0.0
    %103 = vmatpush1.msra.mxu0 0.0
    %104 = vmatprep.subr.mxu0 0.0
    %105 = vmatpush1.msra.mxu0 0.0
    %106 = vmatprep.subr.mxu0 0.0
    %107 = vmatpush1.msra.mxu0 0.0
    %108 = vmatprep.subr.mxu0 0.0
    %109 = vmatpush1.msra.mxu0 0.0
    %110 = vmatprep.subr.mxu0 0.0
    %111 = vmatpush1.msra.mxu0 0.0
    %112 = vmatprep.subr.mxu0 0.0
    %113 = vmatpush1.msra.mxu0 0.0
    %114 = vmatprep.subr.mxu0 0.0
    %115 = vmatpush1.msra.mxu0 0.0
    %116 = vmatprep.subr.mxu0 0.0
    %117 = vmatpush1.msra.mxu0 0.0
    %118 = vmatprep.subr.mxu0 0.0
    %119 = vmatpush1.msra.mxu0 0.0
    %120 = vmatprep.subr.mxu0 0.0
    %121 = vmatpush1.msra.mxu0 0.0
    %122 = vmatprep.subr.mxu0 0.0
    %123 = vmatpush1.msra.mxu0 0.0
    %124 = vmatprep.subr.mxu0 0.0
    %125 = vmatpush1.msra.mxu0 0.0
    %126 = vmatprep.subr.mxu0 0.0
    %127 = vmatpush1.msra.mxu0 0.0
    %128 = vmatprep.subr.mxu0 0.0
    %129 = vmatpush1.msra.mxu0 0.0
    %130 = vmatprep.subr.mxu0 0.0
    %131 = vmatpush1.msra.mxu0 0.0
    %132 = vmatprep.subr.mxu0 0.0
    %133 = vmatpush1.msra.mxu0 0.0
    %134 = vmatprep.subr.mxu0 0.0
    %135 = vmatpush1.msra.mxu0 0.0
    %136 = vmatprep.subr.mxu0 0.0
    %137 = vmatpush1.msra.mxu0 0.0
    %138 = vmatprep.mubr.f32.mxu0 0.0
    %139 = vmatmul.mubr.f32.gmra.mrb[0].mxu0 %v63
    %v140 = vpop.f32.mrb[0].mxu0
    %v141 = vadd.f32 %v60, %v140
    %v142 = vpop.f32.mrb[0].mxu0
    %143 = vmatprep.mubr.f32.mxu0 0.0
    %144 = vmatmul.mubr.f32.gmra.mrb[0].mxu0 %v66
    %v145 = vpop.f32.mrb[0].mxu0
    %v146 = vadd.f32 %v60, %v145
    %v147 = vpop.f32.mrb[0].mxu0
    %148 = vmatprep.mubr.f32.mxu0 0.0
    %149 = vmatmul.mubr.f32.gmra.mrb[0].mxu0 %v69
    %v150 = vpop.f32.mrb[0].mxu0
    %v151 = vadd.f32 %v60, %v150
    %v152 = vpop.f32.mrb[0].mxu0
    %153 = vmatprep.mubr.f32.mxu0 0.0
    %154 = vmatmul.mubr.f32.gmra.mrb[0].mxu0 %v72
    %v155 = vpop.f32.mrb[0].mxu0
    %v156 = vadd.f32 %v60, %v155
    %v157 = vpop.f32.mrb[0].mxu0
    %158 = vdwg.mxu0
    %vm159 = vcmask 261120
    %v160 = vsel %vm159, %v141, 0.0
    %161 = vadd.xlane.f32.xlu0 %v160
    %v162 = vpop.xlane.xlu0 %161
    %v163 = vsel %vm159, %v146, 0.0
    %164 = vadd.xlane.f32.xlu0 %v163
    %v165 = vpop.xlane.xlu0 %164
    %v166 = vsel %vm159, %v151, 0.0
    %167 = vadd.xlane.f32.xlu0 %v166
    %v168 = vpop.xlane.xlu0 %167
    %v169 = vsel %vm159, %v156, 0.0
    %170 = vadd.xlane.f32.xlu0 %v169
    %v171 = vpop.xlane.xlu0 %170
    %v172 = vrcp.pop 32.0
    %v173 = vmul.f32 %v162, %v172
    %v174 = vmul.f32 %v165, %v172
    %v175 = vmul.f32 %v168, %v172
    %v176 = vmul.f32 %v171, %v172
    %v177 = vsub.f32 %v141, %v173
    %v178 = vsub.f32 %v146, %v174
    %v179 = vsub.f32 %v151, %v175
    %v180 = vsub.f32 %v156, %v176
    %v181 = vmul.f32 %v177, %v177
    %v182 = vmul.f32 %v178, %v178
    %v183 = vmul.f32 %v179, %v179
    %v184 = vmul.f32 %v180, %v180
    %v185 = vsel %vm159, %v181, 0.0
    %186 = vadd.xlane.f32.xlu0 %v185
    %v187 = vpop.xlane.xlu0 %186
    %v188 = vsel %vm159, %v182, 0.0
    %189 = vadd.xlane.f32.xlu0 %v188
    %v190 = vpop.xlane.xlu0 %189
    %v191 = vsel %vm159, %v183, 0.0
    %192 = vadd.xlane.f32.xlu0 %v191
    %v193 = vpop.xlane.xlu0 %192
    %v194 = vsel %vm159, %v184, 0.0
    %195 = vadd.xlane.f32.xlu0 %v194
    %v196 = vpop.xlane.xlu0 %195
    %v197 = vmul.f32 %v187, %v172
    %v198 = vmul.f32 %v190, %v172
    %v199 = vmul.f32 %v193, %v172
    %v200 = vmul.f32 %v196, %v172
    %v201 = vadd.f32 %v197, 1e-05
    %v202 = vadd.f32 %v198, 1e-05
    %v203 = vadd.f32 %v199, 1e-05
    %v204 = vadd.f32 %v200, 1e-05
    %v205 = vrsqrt.pop %v201
    %v206 = vrsqrt.pop %v202
    %v207 = vrsqrt.pop %v203
    %v208 = vrsqrt.pop %v204
    %v209 = vmul.f32 %v177, %v205
    %v210 = vmul.f32 %v178, %v206
    %v211 = vmul.f32 %v179, %v207
    %v212 = vmul.f32 %v180, %v208
    %v213 = vlaneseq
    %v214 = vshrl.u32 %v213, 7
    %v215 = vsub.s32 1, %v214
    %v216 = vrot.slane %v43, %v215
    %v217 = vmul.f32 %v209, %v216
    %v218 = vmul.f32 %v210, %v216
    %v219 = vmul.f32 %v211, %v216
    %v220 = vmul.f32 %v212, %v216
    %v221 = vlaneseq
    %v222 = vshrl.u32 %v221, 7
    %v223 = vsub.s32 2, %v222
    %v224 = vrot.slane %v43, %v223
    %v225 = vadd.f32 %v217, %v224
    %v226 = vadd.f32 %v218, %v224
    %v227 = vadd.f32 %v219, %v224
    %v228 = vadd.f32 %v220, %v224
    %229 = vst.msk [vmem:[#allocation2] sm:$0xff] %vm159, %v225
    %230 = vst.msk [vmem:[#allocation2 + $0x8] sm:$0xff] %vm159, %v226
    %231 = vst.msk [vmem:[#allocation2 + $0x10] sm:$0xff] %vm159, %v227
    %232 = vst.msk [vmem:[#allocation2 + $0x18] sm:$0xff] %vm159, %v228
    %v233 = vld [vmem:[%s2] sm:$0xff]
    %v234 = vsel %vm159, %v233, 0.0
    %235 = vadd.xlane.f32.xlu0 %v234
    %v236 = vpop.xlane.xlu0 %235
    %v237 = vmul.f32 %v236, %v172
    %v238 = vsub.f32 %v233, %v237
    %v239 = vmul.f32 %v238, %v238
    %v240 = vsel %vm159, %v239, 0.0
    %241 = vadd.xlane.f32.xlu0 %v240
    %v242 = vpop.xlane.xlu0 %241
    %v243 = vmul.f32 %v242, %v172
    %v244 = vadd.f32 %v243, 1e-05
    %v245 = vrsqrt.pop %v244
    %v246 = vmul.f32 %v238, %v245
    %v247 = vlaneseq
    %v248 = vshrl.u32 %v247, 7
    %v249 = vsub.s32 3, %v248
    %v250 = vrot.slane %v43, %v249
    %v251 = vmul.f32 %v246, %v250
    %v252 = vlaneseq
    %v253 = vshrl.u32 %v252, 7
    %v254 = vsub.s32 4, %v253
    %v255 = vrot.slane %v43, %v254
    %v256 = vadd.f32 %v251, %v255
    %v257 = vsel %vm159, %v225, 0.0
    %258 = vadd.xlane.f32.xlu0 %v257
    %v259 = vpop.xlane.xlu0 %258
    %v260 = vsel %vm159, %v226, 0.0
    %261 = vadd.xlane.f32.xlu0 %v260
    %v262 = vpop.xlane.xlu0 %261
    %v263 = vsel %vm159, %v227, 0.0
    %264 = vadd.xlane.f32.xlu0 %v263
    %v265 = vpop.xlane.xlu0 %264
    %v266 = vsel %vm159, %v228, 0.0
    %267 = vadd.xlane.f32.xlu0 %v266
    %v268 = vpop.xlane.xlu0 %267
    %v269 = vmul.f32 %v259, %v172
    %v270 = vmul.f32 %v262, %v172
    %v271 = vmul.f32 %v265, %v172
    %v272 = vmul.f32 %v268, %v172
    %v273 = vsub.f32 %v225, %v269
    %v274 = vsub.f32 %v226, %v270
    %v275 = vsub.f32 %v227, %v271
    %v276 = vsub.f32 %v228, %v272
    %v277 = vmul.f32 %v273, %v273
    %v278 = vmul.f32 %v274, %v274
    %v279 = vmul.f32 %v275, %v275
    %v280 = vmul.f32 %v276, %v276
    %v281 = vsel %vm159, %v277, 0.0
    %282 = vadd.xlane.f32.xlu0 %v281
    %v283 = vpop.xlane.xlu0 %282
    %v284 = vsel %vm159, %v278, 0.0
    %285 = vadd.xlane.f32.xlu0 %v284
    %v286 = vpop.xlane.xlu0 %285
    %v287 = vsel %vm159, %v279, 0.0
    %288 = vadd.xlane.f32.xlu0 %v287
    %v289 = vpop.xlane.xlu0 %288
    %v290 = vsel %vm159, %v280, 0.0
    %291 = vadd.xlane.f32.xlu0 %v290
    %v292 = vpop.xlane.xlu0 %291
    %v293 = vmul.f32 %v283, %v172
    %v294 = vmul.f32 %v286, %v172
    %v295 = vmul.f32 %v289, %v172
    %v296 = vmul.f32 %v292, %v172
    %v297 = vadd.f32 %v293, 1e-05
    %v298 = vadd.f32 %v294, 1e-05
    %v299 = vadd.f32 %v295, 1e-05
    %v300 = vadd.f32 %v296, 1e-05
    %v301 = vrsqrt.pop %v297
    %v302 = vrsqrt.pop %v298
    %v303 = vrsqrt.pop %v299
    %v304 = vrsqrt.pop %v300
    %v305 = vmul.f32 %v273, %v301
    %v306 = vmul.f32 %v274, %v302
    %v307 = vmul.f32 %v275, %v303
    %v308 = vmul.f32 %v276, %v304
    %v309 = vlaneseq
    %v310 = vshrl.u32 %v309, 7
    %v311 = vsub.s32 5, %v310
    %v312 = vrot.slane %v43, %v311
    %v313 = vmul.f32 %v305, %v312
    %v314 = vmul.f32 %v306, %v312
    %v315 = vmul.f32 %v307, %v312
    %v316 = vmul.f32 %v308, %v312
    %v317 = vlaneseq
    %v318 = vshrl.u32 %v317, 7
    %v319 = vsub.s32 6, %v318
    %v320 = vrot.slane %v43, %v319
    %v321 = vadd.f32 %v313, %v320
    %v322 = vadd.f32 %v314, %v320
    %v323 = vadd.f32 %v315, %v320
    %v324 = vadd.f32 %v316, %v320
    %v325 = vld [vmem:[%s3] sm:$0xff]
    %v326 = vld [vmem:[%s3 + $0x8] sm:$0xff]
    %v327 = vld [vmem:[%s3 + $0x10] sm:$0xff]
    %v328 = vld [vmem:[%s3 + $0x18] sm:$0xff]
    %v330 = vsel %vm159, %v256, 0
    %332 = vmatprep.subr.mxu0 0.0
    %333 = vmatpush1.msra.mxu0 %v325
    %334 = vmatprep.subr.mxu0 0.0
    %335 = vmatpush1.msra.mxu0 %v326
    %336 = vmatprep.subr.mxu0 0.0
    %337 = vmatpush1.msra.mxu0 %v327
    %338 = vmatprep.subr.mxu0 0.0
    %339 = vmatpush1.msra.mxu0 %v328
    %340 = vmatprep.subr.mxu0 0.0
    %341 = vmatpush1.msra.mxu0 0.0
    %342 = vmatprep.subr.mxu0 0.0
    %343 = vmatpush1.msra.mxu0 0.0
    %344 = vmatprep.subr.mxu0 0.0
    %345 = vmatpush1.msra.mxu0 0.0
    %346 = vmatprep.subr.mxu0 0.0
    %347 = vmatpush1.msra.mxu0 0.0
    %348 = vmatprep.subr.mxu0 0.0
    %349 = vmatpush1.msra.mxu0 0.0
    %350 = vmatprep.subr.mxu0 0.0
    %351 = vmatpush1.msra.mxu0 0.0
    %352 = vmatprep.subr.mxu0 0.0
    %353 = vmatpush1.msra.mxu0 0.0
    %354 = vmatprep.subr.mxu0 0.0
    %355 = vmatpush1.msra.mxu0 0.0
    %356 = vmatprep.subr.mxu0 0.0
    %357 = vmatpush1.msra.mxu0 0.0
    %358 = vmatprep.subr.mxu0 0.0
    %359 = vmatpush1.msra.mxu0 0.0
    %360 = vmatprep.subr.mxu0 0.0
    %361 = vmatpush1.msra.mxu0 0.0
    %362 = vmatprep.subr.mxu0 0.0
    %363 = vmatpush1.msra.mxu0 0.0
    %364 = vmatprep.subr.mxu0 0.0
    %365 = vmatpush1.msra.mxu0 0.0
    %366 = vmatprep.subr.mxu0 0.0
    %367 = vmatpush1.msra.mxu0 0.0
    %368 = vmatprep.subr.mxu0 0.0
    %369 = vmatpush1.msra.mxu0 0.0
    %370 = vmatprep.subr.mxu0 0.0
    %371 = vmatpush1.msra.mxu0 0.0
    %372 = vmatprep.subr.mxu0 0.0
    %373 = vmatpush1.msra.mxu0 0.0
    %374 = vmatprep.subr.mxu0 0.0
    %375 = vmatpush1.msra.mxu0 0.0
    %376 = vmatprep.subr.mxu0 0.0
    %377 = vmatpush1.msra.mxu0 0.0
    %378 = vmatprep.subr.mxu0 0.0
    %379 = vmatpush1.msra.mxu0 0.0
    %380 = vmatprep.subr.mxu0 0.0
    %381 = vmatpush1.msra.mxu0 0.0
    %382 = vmatprep.subr.mxu0 0.0
    %383 = vmatpush1.msra.mxu0 0.0
    %384 = vmatprep.subr.mxu0 0.0
    %385 = vmatpush1.msra.mxu0 0.0
    %386 = vmatprep.subr.mxu0 0.0
    %387 = vmatpush1.msra.mxu0 0.0
    %388 = vmatprep.subr.mxu0 0.0
    %389 = vmatpush1.msra.mxu0 0.0
    %390 = vmatprep.subr.mxu0 0.0
    %391 = vmatpush1.msra.mxu0 0.0
    %392 = vmatprep.subr.mxu0 0.0
    %393 = vmatpush1.msra.mxu0 0.0
    %394 = vmatprep.subr.mxu0 0.0
    %395 = vmatpush1.msra.mxu0 0.0
    %396 = vmatprep.mubr.f32.mxu0 0.0
    %397 = vmatmul.mubr.f32.gmra.mrb[0].mxu0 %v330
    %v398 = vpop.f32.mrb[0].mxu0
    %v399 = vadd.f32 0.0, %v398
    %v400 = vpop.f32.mrb[0].mxu0
    %401 = vdwg.mxu0
    %406 = vrot.lane.b32.xlu0 %v325, 96
    %v407 = vpop.permute.xlu0 %406
    %408 = vrot.lane.b32.xlu0 %v326, 96
    %v409 = vpop.permute.xlu0 %408
    %410 = vrot.lane.b32.xlu0 %v327, 96
    %v411 = vpop.permute.xlu0 %410
    %412 = vrot.lane.b32.xlu0 %v328, 96
    %v413 = vpop.permute.xlu0 %412
    %v419 = vsel %vm159, %v321, 0
    %v422 = vsel %vm159, %v322, 0
    %v425 = vsel %vm159, %v323, 0
    %v428 = vsel %vm159, %v324, 0
    %430 = vmatprep.subr.mxu0 0.0
    %431 = vmatpush1.msra.mxu0 %v407
    %432 = vmatprep.subr.mxu0 0.0
    %433 = vmatpush1.msra.mxu0 %v409
    %434 = vmatprep.subr.mxu0 0.0
    %435 = vmatpush1.msra.mxu0 %v411
    %436 = vmatprep.subr.mxu0 0.0
    %437 = vmatpush1.msra.mxu0 %v413
    %438 = vmatprep.subr.mxu0 0.0
    %439 = vmatpush1.msra.mxu0 0.0
    %440 = vmatprep.subr.mxu0 0.0
    %441 = vmatpush1.msra.mxu0 0.0
    %442 = vmatprep.subr.mxu0 0.0
    %443 = vmatpush1.msra.mxu0 0.0
    %444 = vmatprep.subr.mxu0 0.0
    %445 = vmatpush1.msra.mxu0 0.0
    %446 = vmatprep.subr.mxu0 0.0
    %447 = vmatpush1.msra.mxu0 0.0
    %448 = vmatprep.subr.mxu0 0.0
    %449 = vmatpush1.msra.mxu0 0.0
    %450 = vmatprep.subr.mxu0 0.0
    %451 = vmatpush1.msra.mxu0 0.0
    %452 = vmatprep.subr.mxu0 0.0
    %453 = vmatpush1.msra.mxu0 0.0
    %454 = vmatprep.subr.mxu0 0.0
    %455 = vmatpush1.msra.mxu0 0.0
    %456 = vmatprep.subr.mxu0 0.0
    %457 = vmatpush1.msra.mxu0 0.0
    %458 = vmatprep.subr.mxu0 0.0
    %459 = vmatpush1.msra.mxu0 0.0
    %460 = vmatprep.subr.mxu0 0.0
    %461 = vmatpush1.msra.mxu0 0.0
    %462 = vmatprep.subr.mxu0 0.0
    %463 = vmatpush1.msra.mxu0 0.0
    %464 = vmatprep.subr.mxu0 0.0
    %465 = vmatpush1.msra.mxu0 0.0
    %466 = vmatprep.subr.mxu0 0.0
    %467 = vmatpush1.msra.mxu0 0.0
    %468 = vmatprep.subr.mxu0 0.0
    %469 = vmatpush1.msra.mxu0 0.0
    %470 = vmatprep.subr.mxu0 0.0
    %471 = vmatpush1.msra.mxu0 0.0
    %472 = vmatprep.subr.mxu0 0.0
    %473 = vmatpush1.msra.mxu0 0.0
    %474 = vmatprep.subr.mxu0 0.0
    %475 = vmatpush1.msra.mxu0 0.0
    %476 = vmatprep.subr.mxu0 0.0
    %477 = vmatpush1.msra.mxu0 0.0
    %478 = vmatprep.subr.mxu0 0.0
    %479 = vmatpush1.msra.mxu0 0.0
    %480 = vmatprep.subr.mxu0 0.0
    %481 = vmatpush1.msra.mxu0 0.0
    %482 = vmatprep.subr.mxu0 0.0
    %483 = vmatpush1.msra.mxu0 0.0
    %484 = vmatprep.subr.mxu0 0.0
    %485 = vmatpush1.msra.mxu0 0.0
    %486 = vmatprep.subr.mxu0 0.0
    %487 = vmatpush1.msra.mxu0 0.0
    %488 = vmatprep.subr.mxu0 0.0
    %489 = vmatpush1.msra.mxu0 0.0
    %490 = vmatprep.subr.mxu0 0.0
    %491 = vmatpush1.msra.mxu0 0.0
    %492 = vmatprep.subr.mxu0 0.0
    %493 = vmatpush1.msra.mxu0 0.0
    %494 = vmatprep.mubr.f32.mxu0 0.0
    %495 = vmatmul.mubr.f32.gmra.mrb[0].mxu0 %v419
    %v496 = vpop.f32.mrb[0].mxu0
    %v497 = vadd.f32 0.0, %v496
    %v498 = vpop.f32.mrb[0].mxu0
    %499 = vmatprep.mubr.f32.mxu0 0.0
    %500 = vmatmul.mubr.f32.gmra.mrb[0].mxu0 %v422
    %v501 = vpop.f32.mrb[0].mxu0
    %v502 = vadd.f32 0.0, %v501
    %v503 = vpop.f32.mrb[0].mxu0
    %504 = vmatprep.mubr.f32.mxu0 0.0
    %505 = vmatmul.mubr.f32.gmra.mrb[0].mxu0 %v425
    %v506 = vpop.f32.mrb[0].mxu0
    %v507 = vadd.f32 0.0, %v506
    %v508 = vpop.f32.mrb[0].mxu0
    %509 = vmatprep.mubr.f32.mxu0 0.0
    %510 = vmatmul.mubr.f32.gmra.mrb[0].mxu0 %v428
    %v511 = vpop.f32.mrb[0].mxu0
    %v512 = vadd.f32 0.0, %v511
    %v513 = vpop.f32.mrb[0].mxu0
    %514 = vdwg.mxu0
    %v516 = vsel %vm159, %v399, 0
    %v519 = vsel %vm159, %v497, 0
    %v522 = vsel %vm159, %v502, 0
    %524 = vmatprep.subr.mxu0 0.0
    %525 = vmatpush1.xpose.msra.mxu0 %v519
    %526 = vmatprep.subr.mxu0 0.0
    %527 = vmatpush1.xpose.msra.mxu0 %v522
    %528 = vmatprep.subr.mxu0 0.0
    %529 = vmatpush1.xpose.msra.mxu0 0.0
    %530 = vmatprep.subr.mxu0 0.0
    %531 = vmatpush1.xpose.msra.mxu0 0.0
    %532 = vmatprep.subr.mxu0 0.0
    %533 = vmatpush1.xpose.msra.mxu0 0.0
    %534 = vmatprep.subr.mxu0 0.0
    %535 = vmatpush1.xpose.msra.mxu0 0.0
    %536 = vmatprep.subr.mxu0 0.0
    %537 = vmatpush1.xpose.msra.mxu0 0.0
    %538 = vmatprep.subr.mxu0 0.0
    %539 = vmatpush1.xpose.msra.mxu0 0.0
    %540 = vmatprep.subr.mxu0 0.0
    %541 = vmatpush1.xpose.msra.mxu0 0.0
    %542 = vmatprep.subr.mxu0 0.0
    %543 = vmatpush1.xpose.msra.mxu0 0.0
    %544 = vmatprep.subr.mxu0 0.0
    %545 = vmatpush1.xpose.msra.mxu0 0.0
    %546 = vmatprep.subr.mxu0 0.0
    %547 = vmatpush1.xpose.msra.mxu0 0.0
    %548 = vmatprep.subr.mxu0 0.0
    %549 = vmatpush1.xpose.msra.mxu0 0.0
    %550 = vmatprep.subr.mxu0 0.0
    %551 = vmatpush1.xpose.msra.mxu0 0.0
    %552 = vmatprep.subr.mxu0 0.0
    %553 = vmatpush1.xpose.msra.mxu0 0.0
    %554 = vmatprep.subr.mxu0 0.0
    %555 = vmatpush1.xpose.msra.mxu0 0.0
    %556 = vmatprep.subr.mxu0 0.0
    %557 = vmatpush1.xpose.msra.mxu0 0.0
    %558 = vmatprep.subr.mxu0 0.0
    %559 = vmatpush1.xpose.msra.mxu0 0.0
    %560 = vmatprep.subr.mxu0 0.0
    %561 = vmatpush1.xpose.msra.mxu0 0.0
    %562 = vmatprep.subr.mxu0 0.0
    %563 = vmatpush1.xpose.msra.mxu0 0.0
    %564 = vmatprep.subr.mxu0 0.0
    %565 = vmatpush1.xpose.msra.mxu0 0.0
    %566 = vmatprep.subr.mxu0 0.0
    %567 = vmatpush1.xpose.msra.mxu0 0.0
    %568 = vmatprep.subr.mxu0 0.0
    %569 = vmatpush1.xpose.msra.mxu0 0.0
    %570 = vmatprep.subr.mxu0 0.0
    %571 = vmatpush1.xpose.msra.mxu0 0.0
    %572 = vmatprep.subr.mxu0 0.0
    %573 = vmatpush1.xpose.msra.mxu0 0.0
    %574 = vmatprep.subr.mxu0 0.0
    %575 = vmatpush1.xpose.msra.mxu0 0.0
    %576 = vmatprep.subr.mxu0 0.0
    %577 = vmatpush1.xpose.msra.mxu0 0.0
    %578 = vmatprep.subr.mxu0 0.0
    %579 = vmatpush1.xpose.msra.mxu0 0.0
    %580 = vmatprep.subr.mxu0 0.0
    %581 = vmatpush1.xpose.msra.mxu0 0.0
    %582 = vmatprep.subr.mxu0 0.0
    %583 = vmatpush1.xpose.msra.mxu0 0.0
    %584 = vmatprep.subr.mxu0 0.0
    %585 = vmatpush1.xpose.msra.mxu0 0.0
    %586 = vmatprep.subr.mxu0 0.0
    %587 = vmatpush1.xpose.msra.mxu0 0.0
    %588 = vmatprep.mubr.f32.mxu0 0.0
    %589 = vmatmul.mubr.f32.gmra.mrb[0].mxu0 %v516
    %v590 = vpop.f32.mrb[0].mxu0
    %v591 = vadd.f32 0.0, %v590
    %v592 = vpop.f32.mrb[0].mxu0
    %593 = vdwg.mxu0
    %v594 = vmul.f32 %v591, 0.17677669
    %vm595 = vcmask 130048
    %v596 = vsel %vm595, %v594, -inf
    %597 = vmax.xlane.f32.xlu0 %v596
    %v598 = vpop.xlane.xlu0 %597
    %v599 = vsub.f32 %v594, %v598
    %v600 = vmul.f32 %v599, 1.442695
    %v601 = vpow.pop %v600
    %v602 = vsel %vm595, %v601, 0.0
    %603 = vadd.xlane.f32.xlu0 %v602
    %v604 = vpop.xlane.xlu0 %603
    %v605 = vrcp.pop %v604
    %v606 = vmul.f32 %v601, %v605
    %607 = vrot.lane.b32.xlu0 %v497, 96
    %v608 = vpop.permute.xlu0 %607
    %609 = vrot.lane.b32.xlu0 %v502, 96
    %v610 = vpop.permute.xlu0 %609
    %v614 = vsel %vm595, %v606, 0
    %616 = vmatprep.subr.mxu0 0.0
    %617 = vmatpush1.msra.mxu0 %v608
    %618 = vmatprep.subr.mxu0 0.0
    %619 = vmatpush1.msra.mxu0 %v610
    %620 = vmatprep.subr.mxu0 0.0
    %621 = vmatpush1.msra.mxu0 0.0
    %622 = vmatprep.subr.mxu0 0.0
    %623 = vmatpush1.msra.mxu0 0.0
    %624 = vmatprep.subr.mxu0 0.0
    %625 = vmatpush1.msra.mxu0 0.0
    %626 = vmatprep.subr.mxu0 0.0
    %627 = vmatpush1.msra.mxu0 0.0
    %628 = vmatprep.subr.mxu0 0.0
    %629 = vmatpush1.msra.mxu0 0.0
    %630 = vmatprep.subr.mxu0 0.0
    %631 = vmatpush1.msra.mxu0 0.0
    %632 = vmatprep.subr.mxu0 0.0
    %633 = vmatpush1.msra.mxu0 0.0
    %634 = vmatprep.subr.mxu0 0.0
    %635 = vmatpush1.msra.mxu0 0.0
    %636 = vmatprep.subr.mxu0 0.0
    %637 = vmatpush1.msra.mxu0 0.0
    %638 = vmatprep.subr.mxu0 0.0
    %639 = vmatpush1.msra.mxu0 0.0
    %640 = vmatprep.subr.mxu0 0.0
    %641 = vmatpush1.msra.mxu0 0.0
    %642 = vmatprep.subr.mxu0 0.0
    %643 = vmatpush1.msra.mxu0 0.0
    %644 = vmatprep.subr.mxu0 0.0
    %645 = vmatpush1.msra.mxu0 0.0
    %646 = vmatprep.subr.mxu0 0.0
    %647 = vmatpush1.msra.mxu0 0.0
    %648 = vmatprep.subr.mxu0 0.0
    %649 = vmatpush1.msra.mxu0 0.0
    %650 = vmatprep.subr.mxu0 0.0
    %651 = vmatpush1.msra.mxu0 0.0
    %652 = vmatprep.subr.mxu0 0.0
    %653 = vmatpush1.msra.mxu0 0.0
    %654 = vmatprep.subr.mxu0 0.0
    %655 = vmatpush1.msra.mxu0 0.0
    %656 = vmatprep.subr.mxu0 0.0
    %657 = vmatpush1.msra.mxu0 0.0
    %658 = vmatprep.subr.mxu0 0.0
    %659 = vmatpush1.msra.mxu0 0.0
    %660 = vmatprep.subr.mxu0 0.0
    %661 = vmatpush1.msra.mxu0 0.0
    %662 = vmatprep.subr.mxu0 0.0
    %663 = vmatpush1.msra.mxu0 0.0
    %664 = vmatprep.subr.mxu0 0.0
    %665 = vmatpush1.msra.mxu0 0.0
    %666 = vmatprep.subr.mxu0 0.0
    %667 = vmatpush1.msra.mxu0 0.0
    %668 = vmatprep.subr.mxu0 0.0
    %669 = vmatpush1.msra.mxu0 0.0
    %670 = vmatprep.subr.mxu0 0.0
    %671 = vmatpush1.msra.mxu0 0.0
    %672 = vmatprep.subr.mxu0 0.0
    %673 = vmatpush1.msra.mxu0 0.0
    %674 = vmatprep.subr.mxu0 0.0
    %675 = vmatpush1.msra.mxu0 0.0
    %676 = vmatprep.subr.mxu0 0.0
    %677 = vmatpush1.msra.mxu0 0.0
    %678 = vmatprep.subr.mxu0 0.0
    %679 = vmatpush1.msra.mxu0 0.0
    %680 = vmatprep.mubr.f32.mxu0 0.0
    %681 = vmatmul.mubr.f32.gmra.mrb[0].mxu0 %v614
    %v682 = vpop.f32.mrb[0].mxu0
    %v683 = vadd.f32 0.0, %v682
    %v684 = vpop.f32.mrb[0].mxu0
    %685 = vdwg.mxu0
    %v686 = vld [vmem:[%s4] sm:$0xff]
    %v687 = vld [vmem:[%s4 + $0x8] sm:$0xff]
    %v688 = vld [vmem:[%s4 + $0x10] sm:$0xff]
    %v689 = vld [vmem:[%s4 + $0x18] sm:$0xff]
    %v691 = vsel %vm159, %v683, 0
    %693 = vmatprep.subr.mxu0 0.0
    %694 = vmatpush1.msra.mxu0 %v686
    %695 = vmatprep.subr.mxu0 0.0
    %696 = vmatpush1.msra.mxu0 %v687
    %697 = vmatprep.subr.mxu0 0.0
    %698 = vmatpush1.msra.mxu0 %v688
    %699 = vmatprep.subr.mxu0 0.0
    %700 = vmatpush1.msra.mxu0 %v689
    %701 = vmatprep.subr.mxu0 0.0
    %702 = vmatpush1.msra.mxu0 0.0
    %703 = vmatprep.subr.mxu0 0.0
    %704 = vmatpush1.msra.mxu0 0.0
    %705 = vmatprep.subr.mxu0 0.0
    %706 = vmatpush1.msra.mxu0 0.0
    %707 = vmatprep.subr.mxu0 0.0
    %708 = vmatpush1.msra.mxu0 0.0
    %709 = vmatprep.subr.mxu0 0.0
    %710 = vmatpush1.msra.mxu0 0.0
    %711 = vmatprep.subr.mxu0 0.0
    %712 = vmatpush1.msra.mxu0 0.0
    %713 = vmatprep.subr.mxu0 0.0
    %714 = vmatpush1.msra.mxu0 0.0
    %715 = vmatprep.subr.mxu0 0.0
    %716 = vmatpush1.msra.mxu0 0.0
    %717 = vmatprep.subr.mxu0 0.0
    %718 = vmatpush1.msra.mxu0 0.0
    %719 = vmatprep.subr.mxu0 0.0
    %720 = vmatpush1.msra.mxu0 0.0
    %721 = vmatprep.subr.mxu0 0.0
    %722 = vmatpush1.msra.mxu0 0.0
    %723 = vmatprep.subr.mxu0 0.0
    %724 = vmatpush1.msra.mxu0 0.0
    %725 = vmatprep.subr.mxu0 0.0
    %726 = vmatpush1.msra.mxu0 0.0
    %727 = vmatprep.subr.mxu0 0.0
    %728 = vmatpush1.msra.mxu0 0.0
    %729 = vmatprep.subr.mxu0 0.0
    %730 = vmatpush1.msra.mxu0 0.0
    %731 = vmatprep.subr.mxu0 0.0
    %732 = vmatpush1.msra.mxu0 0.0
    %733 = vmatprep.subr.mxu0 0.0
    %734 = vmatpush1.msra.mxu0 0.0
    %735 = vmatprep.subr.mxu0 0.0
    %736 = vmatpush1.msra.mxu0 0.0
    %737 = vmatprep.subr.mxu0 0.0
    %738 = vmatpush1.msra.mxu0 0.0
    %739 = vmatprep.subr.mxu0 0.0
    %740 = vmatpush1.msra.mxu0 0.0
    %741 = vmatprep.subr.mxu0 0.0
    %742 = vmatpush1.msra.mxu0 0.0
    %743 = vmatprep.subr.mxu0 0.0
    %744 = vmatpush1.msra.mxu0 0.0
    %745 = vmatprep.subr.mxu0 0.0
    %746 = vmatpush1.msra.mxu0 0.0
    %747 = vmatprep.subr.mxu0 0.0
    %748 = vmatpush1.msra.mxu0 0.0
    %749 = vmatprep.subr.mxu0 0.0
    %750 = vmatpush1.msra.mxu0 0.0
    %751 = vmatprep.subr.mxu0 0.0
    %752 = vmatpush1.msra.mxu0 0.0
    %753 = vmatprep.subr.mxu0 0.0
    %754 = vmatpush1.msra.mxu0 0.0
    %755 = vmatprep.subr.mxu0 0.0
    %756 = vmatpush1.msra.mxu0 0.0
    %757 = vmatprep.mubr.f32.mxu0 0.0
    %758 = vmatmul.mubr.f32.gmra.mrb[0].mxu0 %v691
    %v759 = vpop.f32.mrb[0].mxu0
    %v760 = vadd.f32 0.0, %v759
    %v761 = vpop.f32.mrb[0].mxu0
    %762 = vdwg.mxu0
    %v763 = vadd.f32 %v233, %v760
    %v765 = vsel %vm159, %v507, 0
    %v768 = vsel %vm159, %v512, 0
    %770 = vmatprep.subr.mxu0 0.0
    %771 = vmatpush1.xpose.msra.mxu0 %v765
    %772 = vmatprep.subr.mxu0 0.0
    %773 = vmatpush1.xpose.msra.mxu0 %v768
    %774 = vmatprep.subr.mxu0 0.0
    %775 = vmatpush1.xpose.msra.mxu0 0.0
    %776 = vmatprep.subr.mxu0 0.0
    %777 = vmatpush1.xpose.msra.mxu0 0.0
    %778 = vmatprep.subr.mxu0 0.0
    %779 = vmatpush1.xpose.msra.mxu0 0.0
    %780 = vmatprep.subr.mxu0 0.0
    %781 = vmatpush1.xpose.msra.mxu0 0.0
    %782 = vmatprep.subr.mxu0 0.0
    %783 = vmatpush1.xpose.msra.mxu0 0.0
    %784 = vmatprep.subr.mxu0 0.0
    %785 = vmatpush1.xpose.msra.mxu0 0.0
    %786 = vmatprep.subr.mxu0 0.0
    %787 = vmatpush1.xpose.msra.mxu0 0.0
    %788 = vmatprep.subr.mxu0 0.0
    %789 = vmatpush1.xpose.msra.mxu0 0.0
    %790 = vmatprep.subr.mxu0 0.0
    %791 = vmatpush1.xpose.msra.mxu0 0.0
    %792 = vmatprep.subr.mxu0 0.0
    %793 = vmatpush1.xpose.msra.mxu0 0.0
    %794 = vmatprep.subr.mxu0 0.0
    %795 = vmatpush1.xpose.msra.mxu0 0.0
    %796 = vmatprep.subr.mxu0 0.0
    %797 = vmatpush1.xpose.msra.mxu0 0.0
    %798 = vmatprep.subr.mxu0 0.0
    %799 = vmatpush1.xpose.msra.mxu0 0.0
    %800 = vmatprep.subr.mxu0 0.0
    %801 = vmatpush1.xpose.msra.mxu0 0.0
    %802 = vmatprep.subr.mxu0 0.0
    %803 = vmatpush1.xpose.msra.mxu0 0.0
    %804 = vmatprep.subr.mxu0 0.0
    %805 = vmatpush1.xpose.msra.mxu0 0.0
    %806 = vmatprep.subr.mxu0 0.0
    %807 = vmatpush1.xpose.msra.mxu0 0.0
    %808 = vmatprep.subr.mxu0 0.0
    %809 = vmatpush1.xpose.msra.mxu0 0.0
    %810 = vmatprep.subr.mxu0 0.0
    %811 = vmatpush1.xpose.msra.mxu0 0.0
    %812 = vmatprep.subr.mxu0 0.0
    %813 = vmatpush1.xpose.msra.mxu0 0.0
    %814 = vmatprep.subr.mxu0 0.0
    %815 = vmatpush1.xpose.msra.mxu0 0.0
    %816 = vmatprep.subr.mxu0 0.0
    %817 = vmatpush1.xpose.msra.mxu0 0.0
    %818 = vmatprep.subr.mxu0 0.0
    %819 = vmatpush1.xpose.msra.mxu0 0.0
    %820 = vmatprep.subr.mxu0 0.0
    %821 = vmatpush1.xpose.msra.mxu0 0.0
    %822 = vmatprep.subr.mxu0 0.0
    %823 = vmatpush1.xpose.msra.mxu0 0.0
    %824 = vmatprep.subr.mxu0 0.0
    %825 = vmatpush1.xpose.msra.mxu0 0.0
    %826 = vmatprep.subr.mxu0 0.0
    %827 = vmatpush1.xpose.msra.mxu0 0.0
    %828 = vmatprep.subr.mxu0 0.0
    %829 = vmatpush1.xpose.msra.mxu0 0.0
    %830 = vmatprep.subr.mxu0 0.0
    %831 = vmatpush1.xpose.msra.mxu0 0.0
    %832 = vmatprep.subr.mxu0 0.0
    %833 = vmatpush1.xpose.msra.mxu0 0.0
    %834 = vmatprep.mubr.f32.mxu0 0.0
    %835 = vmatmul.mubr.f32.gmra.mrb[0].mxu0 %v516
    %v836 = vpop.f32.mrb[0].mxu0
    %v837 = vadd.f32 0.0, %v836
    %v838 = vpop.f32.mrb[0].mxu0
    %839 = vdwg.mxu0
    %v840 = vmul.f32 %v837, 0.17677669
    %v841 = vsel %vm595, %v840, -inf
    %842 = vmax.xlane.f32.xlu0 %v841
    %v843 = vpop.xlane.xlu0 %842
    %v844 = vsub.f32 %v840, %v843
    %v845 = vmul.f32 %v844, 1.442695
    %v846 = vpow.pop %v845
    %v847 = vsel %vm595, %v846, 0.0
    %848 = vadd.xlane.f32.xlu0 %v847
    %v849 = vpop.xlane.xlu0 %848
    %v850 = vrcp.pop %v849
    %v851 = vmul.f32 %v846, %v850
    %852 = vrot.lane.b32.xlu0 %v507, 96
    %v853 = vpop.permute.xlu0 %852
    %854 = vrot.lane.b32.xlu0 %v512, 96
    %v855 = vpop.permute.xlu0 %854
    %v859 = vsel %vm595, %v851, 0
    %861 = vmatprep.subr.mxu0 0.0
    %862 = vmatpush1.msra.mxu0 %v853
    %863 = vmatprep.subr.mxu0 0.0
    %864 = vmatpush1.msra.mxu0 %v855
    %865 = vmatprep.subr.mxu0 0.0
    %866 = vmatpush1.msra.mxu0 0.0
    %867 = vmatprep.subr.mxu0 0.0
    %868 = vmatpush1.msra.mxu0 0.0
    %869 = vmatprep.subr.mxu0 0.0
    %870 = vmatpush1.msra.mxu0 0.0
    %871 = vmatprep.subr.mxu0 0.0
    %872 = vmatpush1.msra.mxu0 0.0
    %873 = vmatprep.subr.mxu0 0.0
    %874 = vmatpush1.msra.mxu0 0.0
    %875 = vmatprep.subr.mxu0 0.0
    %876 = vmatpush1.msra.mxu0 0.0
    %877 = vmatprep.subr.mxu0 0.0
    %878 = vmatpush1.msra.mxu0 0.0
    %879 = vmatprep.subr.mxu0 0.0
    %880 = vmatpush1.msra.mxu0 0.0
    %881 = vmatprep.subr.mxu0 0.0
    %882 = vmatpush1.msra.mxu0 0.0
    %883 = vmatprep.subr.mxu0 0.0
    %884 = vmatpush1.msra.mxu0 0.0
    %885 = vmatprep.subr.mxu0 0.0
    %886 = vmatpush1.msra.mxu0 0.0
    %887 = vmatprep.subr.mxu0 0.0
    %888 = vmatpush1.msra.mxu0 0.0
    %889 = vmatprep.subr.mxu0 0.0
    %890 = vmatpush1.msra.mxu0 0.0
    %891 = vmatprep.subr.mxu0 0.0
    %892 = vmatpush1.msra.mxu0 0.0
    %893 = vmatprep.subr.mxu0 0.0
    %894 = vmatpush1.msra.mxu0 0.0
    %895 = vmatprep.subr.mxu0 0.0
    %896 = vmatpush1.msra.mxu0 0.0
    %897 = vmatprep.subr.mxu0 0.0
    %898 = vmatpush1.msra.mxu0 0.0
    %899 = vmatprep.subr.mxu0 0.0
    %900 = vmatpush1.msra.mxu0 0.0
    %901 = vmatprep.subr.mxu0 0.0
    %902 = vmatpush1.msra.mxu0 0.0
    %903 = vmatprep.subr.mxu0 0.0
    %904 = vmatpush1.msra.mxu0 0.0
    %905 = vmatprep.subr.mxu0 0.0
    %906 = vmatpush1.msra.mxu0 0.0
    %907 = vmatprep.subr.mxu0 0.0
    %908 = vmatpush1.msra.mxu0 0.0
    %909 = vmatprep.subr.mxu0 0.0
    %910 = vmatpush1.msra.mxu0 0.0
    %911 = vmatprep.subr.mxu0 0.0
    %912 = vmatpush1.msra.mxu0 0.0
    %913 = vmatprep.subr.mxu0 0.0
    %914 = vmatpush1.msra.mxu0 0.0
    %915 = vmatprep.subr.mxu0 0.0
    %916 = vmatpush1.msra.mxu0 0.0
    %917 = vmatprep.subr.mxu0 0.0
    %918 = vmatpush1.msra.mxu0 0.0
    %919 = vmatprep.subr.mxu0 0.0
    %920 = vmatpush1.msra.mxu0 0.0
    %921 = vmatprep.subr.mxu0 0.0
    %922 = vmatpush1.msra.mxu0 0.0
    %923 = vmatprep.subr.mxu0 0.0
    %924 = vmatpush1.msra.mxu0 0.0
    %925 = vmatprep.mubr.f32.mxu0 0.0
    %926 = vmatmul.mubr.f32.gmra.mrb[0].mxu0 %v859
    %v927 = vpop.f32.mrb[0].mxu0
    %v928 = vadd.f32 0.0, %v927
    %v929 = vpop.f32.mrb[0].mxu0
    %930 = vdwg.mxu0
    %v932 = vsel %vm159, %v928, 0
    %934 = vmatprep.subr.mxu0 0.0
    %935 = vmatpush1.msra.mxu0 %v686
    %936 = vmatprep.subr.mxu0 0.0
    %937 = vmatpush1.msra.mxu0 %v687
    %938 = vmatprep.subr.mxu0 0.0
    %939 = vmatpush1.msra.mxu0 %v688
    %940 = vmatprep.subr.mxu0 0.0
    %941 = vmatpush1.msra.mxu0 %v689
    %942 = vmatprep.subr.mxu0 0.0
    %943 = vmatpush1.msra.mxu0 0.0
    %944 = vmatprep.subr.mxu0 0.0
    %945 = vmatpush1.msra.mxu0 0.0
    %946 = vmatprep.subr.mxu0 0.0
    %947 = vmatpush1.msra.mxu0 0.0
    %948 = vmatprep.subr.mxu0 0.0
    %949 = vmatpush1.msra.mxu0 0.0
    %950 = vmatprep.subr.mxu0 0.0
    %951 = vmatpush1.msra.mxu0 0.0
    %952 = vmatprep.subr.mxu0 0.0
    %953 = vmatpush1.msra.mxu0 0.0
    %954 = vmatprep.subr.mxu0 0.0
    %955 = vmatpush1.msra.mxu0 0.0
    %956 = vmatprep.subr.mxu0 0.0
    %957 = vmatpush1.msra.mxu0 0.0
    %958 = vmatprep.subr.mxu0 0.0
    %959 = vmatpush1.msra.mxu0 0.0
    %960 = vmatprep.subr.mxu0 0.0
    %961 = vmatpush1.msra.mxu0 0.0
    %962 = vmatprep.subr.mxu0 0.0
    %963 = vmatpush1.msra.mxu0 0.0
    %964 = vmatprep.subr.mxu0 0.0
    %965 = vmatpush1.msra.mxu0 0.0
    %966 = vmatprep.subr.mxu0 0.0
    %967 = vmatpush1.msra.mxu0 0.0
    %968 = vmatprep.subr.mxu0 0.0
    %969 = vmatpush1.msra.mxu0 0.0
    %970 = vmatprep.subr.mxu0 0.0
    %971 = vmatpush1.msra.mxu0 0.0
    %972 = vmatprep.subr.mxu0 0.0
    %973 = vmatpush1.msra.mxu0 0.0
    %974 = vmatprep.subr.mxu0 0.0
    %975 = vmatpush1.msra.mxu0 0.0
    %976 = vmatprep.subr.mxu0 0.0
    %977 = vmatpush1.msra.mxu0 0.0
    %978 = vmatprep.subr.mxu0 0.0
    %979 = vmatpush1.msra.mxu0 0.0
    %980 = vmatprep.subr.mxu0 0.0
    %981 = vmatpush1.msra.mxu0 0.0
    %982 = vmatprep.subr.mxu0 0.0
    %983 = vmatpush1.msra.mxu0 0.0
    %984 = vmatprep.subr.mxu0 0.0
    %985 = vmatpush1.msra.mxu0 0.0
    %986 = vmatprep.subr.mxu0 0.0
    %987 = vmatpush1.msra.mxu0 0.0
    %988 = vmatprep.subr.mxu0 0.0
    %989 = vmatpush1.msra.mxu0 0.0
    %990 = vmatprep.subr.mxu0 0.0
    %991 = vmatpush1.msra.mxu0 0.0
    %992 = vmatprep.subr.mxu0 0.0
    %993 = vmatpush1.msra.mxu0 0.0
    %994 = vmatprep.subr.mxu0 0.0
    %995 = vmatpush1.msra.mxu0 0.0
    %996 = vmatprep.subr.mxu0 0.0
    %997 = vmatpush1.msra.mxu0 0.0
    %998 = vmatprep.mubr.f32.mxu0 0.0
    %999 = vmatmul.mubr.f32.gmra.mrb[0].mxu0 %v932
    %v1000 = vpop.f32.mrb[0].mxu0
    %v1001 = vadd.f32 0.0, %v1000
    %v1002 = vpop.f32.mrb[0].mxu0
    %1003 = vdwg.mxu0
    %v1004 = vadd.f32 %v233, %v1001
    %v1005 = vsel %vm159, %v763, 0.0
    %1006 = vadd.xlane.f32.xlu0 %v1005
    %v1007 = vpop.xlane.xlu0 %1006
    %v1008 = vsel %vm159, %v1004, 0.0
    %1009 = vadd.xlane.f32.xlu0 %v1008
    %v1010 = vpop.xlane.xlu0 %1009
    %v1011 = vmul.f32 %v1007, %v172
    %v1012 = vmul.f32 %v1010, %v172
    %v1013 = vsub.f32 %v763, %v1011
    %v1014 = vsub.f32 %v1004, %v1012
    %v1015 = vmul.f32 %v1013, %v1013
    %v1016 = vmul.f32 %v1014, %v1014
    %v1017 = vsel %vm159, %v1015, 0.0
    %1018 = vadd.xlane.f32.xlu0 %v1017
    %v1019 = vpop.xlane.xlu0 %1018
    %v1020 = vsel %vm159, %v1016, 0.0
    %1021 = vadd.xlane.f32.xlu0 %v1020
    %v1022 = vpop.xlane.xlu0 %1021
    %v1023 = vmul.f32 %v1019, %v172
    %v1024 = vmul.f32 %v1022, %v172
    %v1025 = vadd.f32 %v1023, 1e-05
    %v1026 = vadd.f32 %v1024, 1e-05
    %v1027 = vrsqrt.pop %v1025
    %v1028 = vrsqrt.pop %v1026
    %v1029 = vmul.f32 %v1013, %v1027
    %v1030 = vmul.f32 %v1014, %v1028
    %v1031 = vlaneseq
    %v1032 = vshrl.u32 %v1031, 7
    %v1033 = vsub.s32 7, %v1032
    %v1034 = vrot.slane %v43, %v1033
    %v1035 = vmul.f32 %v1029, %v1034
    %v1036 = vmul.f32 %v1030, %v1034
    %v1037 = vlaneseq
    %v1038 = vshrl.u32 %v1037, 7
    %v1039 = vsub.s32 0, %v1038
    %v1040 = vrot.slane %v44, %v1039
    %v1041 = vadd.f32 %v1035, %v1040
    %v1042 = vadd.f32 %v1036, %v1040
    %v1043 = vld [vmem:[%s5] sm:$0xff]
    %v1044 = vld [vmem:[%s5 + $0x8] sm:$0xff]
    %v1045 = vld [vmem:[%s5 + $0x10] sm:$0xff]
    %v1046 = vld [vmem:[%s5 + $0x18] sm:$0xff]
    %v1047 = vld [vmem:[%s6] sm:$0x1]
    %v1049 = vlaneseq
    %v1050 = vshrl.u32 %v1049, 7
    %v1051 = vsub.s32 0, %v1050
    %v1052 = vrot.slane %v1047, %v1051
    %v1055 = vsel %vm159, %v1041, 0
    %v1058 = vsel %vm159, %v1042, 0
    %1060 = vmatprep.subr.mxu0 0.0
    %1061 = vmatpush1.msra.mxu0 %v1043
    %1062 = vmatprep.subr.mxu0 0.0
    %1063 = vmatpush1.msra.mxu0 %v1044
    %1064 = vmatprep.subr.mxu0 0.0
    %1065 = vmatpush1.msra.mxu0 %v1045
    %1066 = vmatprep.subr.mxu0 0.0
    %1067 = vmatpush1.msra.mxu0 %v1046
    %1068 = vmatprep.subr.mxu0 0.0
    %1069 = vmatpush1.msra.mxu0 0.0
    %1070 = vmatprep.subr.mxu0 0.0
    %1071 = vmatpush1.msra.mxu0 0.0
    %1072 = vmatprep.subr.mxu0 0.0
    %1073 = vmatpush1.msra.mxu0 0.0
    %1074 = vmatprep.subr.mxu0 0.0
    %1075 = vmatpush1.msra.mxu0 0.0
    %1076 = vmatprep.subr.mxu0 0.0
    %1077 = vmatpush1.msra.mxu0 0.0
    %1078 = vmatprep.subr.mxu0 0.0
    %1079 = vmatpush1.msra.mxu0 0.0
    %1080 = vmatprep.subr.mxu0 0.0
    %1081 = vmatpush1.msra.mxu0 0.0
    %1082 = vmatprep.subr.mxu0 0.0
    %1083 = vmatpush1.msra.mxu0 0.0
    %1084 = vmatprep.subr.mxu0 0.0
    %1085 = vmatpush1.msra.mxu0 0.0
    %1086 = vmatprep.subr.mxu0 0.0
    %1087 = vmatpush1.msra.mxu0 0.0
    %1088 = vmatprep.subr.mxu0 0.0
    %1089 = vmatpush1.msra.mxu0 0.0
    %1090 = vmatprep.subr.mxu0 0.0
    %1091 = vmatpush1.msra.mxu0 0.0
    %1092 = vmatprep.subr.mxu0 0.0
    %1093 = vmatpush1.msra.mxu0 0.0
    %1094 = vmatprep.subr.mxu0 0.0
    %1095 = vmatpush1.msra.mxu0 0.0
    %1096 = vmatprep.subr.mxu0 0.0
    %1097 = vmatpush1.msra.mxu0 0.0
    %1098 = vmatprep.subr.mxu0 0.0
    %1099 = vmatpush1.msra.mxu0 0.0
    %1100 = vmatprep.subr.mxu0 0.0
    %1101 = vmatpush1.msra.mxu0 0.0
    %1102 = vmatprep.subr.mxu0 0.0
    %1103 = vmatpush1.msra.mxu0 0.0
    %1104 = vmatprep.subr.mxu0 0.0
    %1105 = vmatpush1.msra.mxu0 0.0
    %1106 = vmatprep.subr.mxu0 0.0
    %1107 = vmatpush1.msra.mxu0 0.0
    %1108 = vmatprep.subr.mxu0 0.0
    %1109 = vmatpush1.msra.mxu0 0.0
    %1110 = vmatprep.subr.mxu0 0.0
    %1111 = vmatpush1.msra.mxu0 0.0
    %1112 = vmatprep.subr.mxu0 0.0
    %1113 = vmatpush1.msra.mxu0 0.0
    %1114 = vmatprep.subr.mxu0 0.0
    %1115 = vmatpush1.msra.mxu0 0.0
    %1116 = vmatprep.subr.mxu0 0.0
    %1117 = vmatpush1.msra.mxu0 0.0
    %1118 = vmatprep.subr.mxu0 0.0
    %1119 = vmatpush1.msra.mxu0 0.0
    %1120 = vmatprep.subr.mxu0 0.0
    %1121 = vmatpush1.msra.mxu0 0.0
    %1122 = vmatprep.subr.mxu0 0.0
    %1123 = vmatpush1.msra.mxu0 0.0
    %1124 = vmatprep.mubr.f32.mxu0 0.0
    %1125 = vmatmul.mubr.f32.gmra.mrb[0].mxu0 %v1055
    %v1126 = vpop.f32.mrb[0].mxu0
    %v1127 = vadd.f32 %v1052, %v1126
    %v1128 = vpop.f32.mrb[0].mxu0
    %1129 = vmatprep.mubr.f32.mxu0 0.0
    %1130 = vmatmul.mubr.f32.gmra.mrb[0].mxu0 %v1058
    %v1131 = vpop.f32.mrb[0].mxu0
    %v1132 = vadd.f32 %v1052, %v1131
    %v1133 = vpop.f32.mrb[0].mxu0
    %1134 = vdwg.mxu0
    %v1135 = vmul.f32 %v1127, 0.5
    %v1136 = vmul.f32 %v1132, 0.5
    %v1137 = vmul.f32 %v1127, 0.044715
    %v1138 = vmul.f32 %v1132, 0.044715
    %v1139 = vmul.f32 %v1137, %v1127
    %v1140 = vmul.f32 %v1138, %v1132
    %v1141 = vmul.f32 %v1139, %v1127
    %v1142 = vmul.f32 %v1140, %v1132
    %v1143 = vadd.f32 %v1127, %v1141
    %v1144 = vadd.f32 %v1132, %v1142
    %v1145 = vmul.f32 %v1143, 0.7978846
    %v1146 = vmul.f32 %v1144, 0.7978846
    %v1147 = vtanh.pop %v1145
    %v1148 = vtanh.pop %v1146
    %v1149 = vadd.f32 %v1147, 1.0
    %v1150 = vadd.f32 %v1148, 1.0
    %v1151 = vmul.f32 %v1135, %v1149
    %v1152 = vmul.f32 %v1136, %v1150
    %v1153 = vld [vmem:[%s7] sm:$0xff]
    %v1154 = vld [vmem:[%s7 + $0x8] sm:$0xff]
    %v1155 = vld [vmem:[%s7 + $0x10] sm:$0xff]
    %v1156 = vld [vmem:[%s7 + $0x18] sm:$0xff]
    %v1157 = vld [vmem:[%s7 + $0x20] sm:$0xff]
    %v1158 = vld [vmem:[%s7 + $0x28] sm:$0xff]
    %v1159 = vld [vmem:[%s7 + $0x30] sm:$0xff]
    %v1160 = vld [vmem:[%s7 + $0x38] sm:$0xff]
    %v1162 = vsel %vm61, %v1151, 0
    %v1165 = vsel %vm61, %v1152, 0
    %1167 = vmatprep.subr.mxu0 0.0
    %1168 = vmatpush1.msra.mxu0 %v1153
    %1169 = vmatprep.subr.mxu0 0.0
    %1170 = vmatpush1.msra.mxu0 %v1154
    %1171 = vmatprep.subr.mxu0 0.0
    %1172 = vmatpush1.msra.mxu0 %v1155
    %1173 = vmatprep.subr.mxu0 0.0
    %1174 = vmatpush1.msra.mxu0 %v1156
    %1175 = vmatprep.subr.mxu0 0.0
    %1176 = vmatpush1.msra.mxu0 %v1157
    %1177 = vmatprep.subr.mxu0 0.0
    %1178 = vmatpush1.msra.mxu0 %v1158
    %1179 = vmatprep.subr.mxu0 0.0
    %1180 = vmatpush1.msra.mxu0 %v1159
    %1181 = vmatprep.subr.mxu0 0.0
    %1182 = vmatpush1.msra.mxu0 %v1160
    %1183 = vmatprep.subr.mxu0 0.0
    %1184 = vmatpush1.msra.mxu0 0.0
    %1185 = vmatprep.subr.mxu0 0.0
    %1186 = vmatpush1.msra.mxu0 0.0
    %1187 = vmatprep.subr.mxu0 0.0
    %1188 = vmatpush1.msra.mxu0 0.0
    %1189 = vmatprep.subr.mxu0 0.0
    %1190 = vmatpush1.msra.mxu0 0.0
    %1191 = vmatprep.subr.mxu0 0.0
    %1192 = vmatpush1.msra.mxu0 0.0
    %1193 = vmatprep.subr.mxu0 0.0
    %1194 = vmatpush1.msra.mxu0 0.0
    %1195 = vmatprep.subr.mxu0 0.0
    %1196 = vmatpush1.msra.mxu0 0.0
    %1197 = vmatprep.subr.mxu0 0.0
    %1198 = vmatpush1.msra.mxu0 0.0
    %1199 = vmatprep.subr.mxu0 0.0
    %1200 = vmatpush1.msra.mxu0 0.0
    %1201 = vmatprep.subr.mxu0 0.0
    %1202 = vmatpush1.msra.mxu0 0.0
    %1203 = vmatprep.subr.mxu0 0.0
    %1204 = vmatpush1.msra.mxu0 0.0
    %1205 = vmatprep.subr.mxu0 0.0
    %1206 = vmatpush1.msra.mxu0 0.0
    %1207 = vmatprep.subr.mxu0 0.0
    %1208 = vmatpush1.msra.mxu0 0.0
    %1209 = vmatprep.subr.mxu0 0.0
    %1210 = vmatpush1.msra.mxu0 0.0
    %1211 = vmatprep.subr.mxu0 0.0
    %1212 = vmatpush1.msra.mxu0 0.0
    %1213 = vmatprep.subr.mxu0 0.0
    %1214 = vmatpush1.msra.mxu0 0.0
    %1215 = vmatprep.subr.mxu0 0.0
    %1216 = vmatpush1.msra.mxu0 0.0
    %1217 = vmatprep.subr.mxu0 0.0
    %1218 = vmatpush1.msra.mxu0 0.0
    %1219 = vmatprep.subr.mxu0 0.0
    %1220 = vmatpush1.msra.mxu0 0.0
    %1221 = vmatprep.subr.mxu0 0.0
    %1222 = vmatpush1.msra.mxu0 0.0
    %1223 = vmatprep.subr.mxu0 0.0
    %1224 = vmatpush1.msra.mxu0 0.0
    %1225 = vmatprep.subr.mxu0 0.0
    %1226 = vmatpush1.msra.mxu0 0.0
    %1227 = vmatprep.subr.mxu0 0.0
    %1228 = vmatpush1.msra.mxu0 0.0
    %1229 = vmatprep.subr.mxu0 0.0
    %1230 = vmatpush1.msra.mxu0 0.0
    %1231 = vmatprep.mubr.f32.mxu0 0.0
    %1232 = vmatmul.mubr.f32.gmra.mrb[0].mxu0 %v1162
    %v1233 = vpop.f32.mrb[0].mxu0
    %v1234 = vadd.f32 0.0, %v1233
    %v1235 = vpop.f32.mrb[0].mxu0
    %1236 = vmatprep.mubr.f32.mxu0 0.0
    %1237 = vmatmul.mubr.f32.gmra.mrb[0].mxu0 %v1165
    %v1238 = vpop.f32.mrb[0].mxu0
    %v1239 = vadd.f32 0.0, %v1238
    %v1240 = vpop.f32.mrb[0].mxu0
    %1241 = vdwg.mxu0
    %v1242 = vadd.f32 %v763, %v1234
    %v1243 = vadd.f32 %v1004, %v1239
    %v1244 = vlaneseq
    %v1245 = vshrl.u32 %v1244, 7
    %v1246 = vsub.s32 1, %v1245
    %v1247 = vrot.slane %v44, %v1246
    %v1248 = vadd.f32 %v1242, %v1247
    %v1249 = vadd.f32 %v1243, %v1247
    %1250 = vst.msk [vmem:[#allocation4] sm:$0xff] %vm159, %v1248
    %1251 = vst.msk [vmem:[#allocation4 + $0x8] sm:$0xff] %vm159, %v1249
    %v1252 = vlaneseq
    %v1253 = vand.u32 %v1252, 127
    %v1254 = vlaneseq
    %v1255 = vshrl.u32 %v1254, 7
    %v1256 = vmul.u32 %v1255, 8
    %vm1257 = vcmp.eq.s32.totalorder %v1253, %v1256
    %v1258 = vsel %vm1257, 1, 0
    %v1259 = vcvt.s32.f32 %v1258
    %v1261 = vsel %vm595, %v1259, 0
    %1263 = vmatprep.subr.mxu0 0.0
    %1264 = vmatpush1.msra.mxu0 %v1248
    %1265 = vmatprep.subr.mxu0 0.0
    %1266 = vmatpush1.msra.mxu0 %v1249
    %1267 = vmatprep.subr.mxu0 0.0
    %1268 = vmatpush1.msra.mxu0 0.0
    %1269 = vmatprep.subr.mxu0 0.0
    %1270 = vmatpush1.msra.mxu0 0.0
    %1271 = vmatprep.subr.mxu0 0.0
    %1272 = vmatpush1.msra.mxu0 0.0
    %1273 = vmatprep.subr.mxu0 0.0
    %1274 = vmatpush1.msra.mxu0 0.0
    %1275 = vmatprep.subr.mxu0 0.0
    %1276 = vmatpush1.msra.mxu0 0.0
    %1277 = vmatprep.subr.mxu0 0.0
    %1278 = vmatpush1.msra.mxu0 0.0
    %1279 = vmatprep.subr.mxu0 0.0
    %1280 = vmatpush1.msra.mxu0 0.0
    %1281 = vmatprep.subr.mxu0 0.0
    %1282 = vmatpush1.msra.mxu0 0.0
    %1283 = vmatprep.subr.mxu0 0.0
    %1284 = vmatpush1.msra.mxu0 0.0
    %1285 = vmatprep.subr.mxu0 0.0
    %1286 = vmatpush1.msra.mxu0 0.0
    %1287 = vmatprep.subr.mxu0 0.0
    %1288 = vmatpush1.msra.mxu0 0.0
    %1289 = vmatprep.subr.mxu0 0.0
    %1290 = vmatpush1.msra.mxu0 0.0
    %1291 = vmatprep.subr.mxu0 0.0
    %1292 = vmatpush1.msra.mxu0 0.0
    %1293 = vmatprep.subr.mxu0 0.0
    %1294 = vmatpush1.msra.mxu0 0.0
    %1295 = vmatprep.subr.mxu0 0.0
    %1296 = vmatpush1.msra.mxu0 0.0
    %1297 = vmatprep.subr.mxu0 0.0
    %1298 = vmatpush1.msra.mxu0 0.0
    %1299 = vmatprep.subr.mxu0 0.0
    %1300 = vmatpush1.msra.mxu0 0.0
    %1301 = vmatprep.subr.mxu0 0.0
    %1302 = vmatpush1.msra.mxu0 0.0
    %1303 = vmatprep.subr.mxu0 0.0
    %1304 = vmatpush1.msra.mxu0 0.0
    %1305 = vmatprep.subr.mxu0 0.0
    %1306 = vmatpush1.msra.mxu0 0.0
    %1307 = vmatprep.subr.mxu0 0.0
    %1308 = vmatpush1.msra.mxu0 0.0
    %1309 = vmatprep.subr.mxu0 0.0
    %1310 = vmatpush1.msra.mxu0 0.0
    %1311 = vmatprep.subr.mxu0 0.0
    %1312 = vmatpush1.msra.mxu0 0.0
    %1313 = vmatprep.subr.mxu0 0.0
    %1314 = vmatpush1.msra.mxu0 0.0
    %1315 = vmatprep.subr.mxu0 0.0
    %1316 = vmatpush1.msra.mxu0 0.0
    %1317 = vmatprep.subr.mxu0 0.0
    %1318 = vmatpush1.msra.mxu0 0.0
    %1319 = vmatprep.subr.mxu0 0.0
    %1320 = vmatpush1.msra.mxu0 0.0
    %1321 = vmatprep.subr.mxu0 0.0
    %1322 = vmatpush1.msra.mxu0 0.0
    %1323 = vmatprep.subr.mxu0 0.0
    %1324 = vmatpush1.msra.mxu0 0.0
    %1325 = vmatprep.subr.mxu0 0.0
    %1326 = vmatpush1.msra.mxu0 0.0
    %1327 = vmatprep.mubr.f32.mxu0 0.0
    %1328 = vmatmul.mubr.f32.gmra.mrb[0].mxu0 %v1261
    %v1329 = vpop.f32.mrb[0].mxu0
    %v1330 = vadd.f32 0.0, %v1329
    %v1331 = vpop.f32.mrb[0].mxu0
    %1332 = vdwg.mxu0
    %v1333 = vld [vmem:[%s8] sm:$0xff]
    %v1334 = vld [vmem:[%s8 + $0x8] sm:$0xff]
    %v1335 = vld [vmem:[%s8 + $0x10] sm:$0xff]
    %v1336 = vld [vmem:[%s8 + $0x18] sm:$0xff]
    %v1337 = vld [vmem:[%s9] sm:$0x1]
    %v1339 = vlaneseq
    %v1340 = vshrl.u32 %v1339, 7
    %v1341 = vsub.s32 0, %v1340
    %v1342 = vrot.slane %v1337, %v1341
    %v1345 = vsel %vm159, %v1330, 0
    %1347 = vmatprep.subr.mxu0 0.0
    %1348 = vmatpush1.msra.mxu0 %v1333
    %1349 = vmatprep.subr.mxu0 0.0
    %1350 = vmatpush1.msra.mxu0 %v1334
    %1351 = vmatprep.subr.mxu0 0.0
    %1352 = vmatpush1.msra.mxu0 %v1335
    %1353 = vmatprep.subr.mxu0 0.0
    %1354 = vmatpush1.msra.mxu0 %v1336
    %1355 = vmatprep.subr.mxu0 0.0
    %1356 = vmatpush1.msra.mxu0 0.0
    %1357 = vmatprep.subr.mxu0 0.0
    %1358 = vmatpush1.msra.mxu0 0.0
    %1359 = vmatprep.subr.mxu0 0.0
    %1360 = vmatpush1.msra.mxu0 0.0
    %1361 = vmatprep.subr.mxu0 0.0
    %1362 = vmatpush1.msra.mxu0 0.0
    %1363 = vmatprep.subr.mxu0 0.0
    %1364 = vmatpush1.msra.mxu0 0.0
    %1365 = vmatprep.subr.mxu0 0.0
    %1366 = vmatpush1.msra.mxu0 0.0
    %1367 = vmatprep.subr.mxu0 0.0
    %1368 = vmatpush1.msra.mxu0 0.0
    %1369 = vmatprep.subr.mxu0 0.0
    %1370 = vmatpush1.msra.mxu0 0.0
    %1371 = vmatprep.subr.mxu0 0.0
    %1372 = vmatpush1.msra.mxu0 0.0
    %1373 = vmatprep.subr.mxu0 0.0
    %1374 = vmatpush1.msra.mxu0 0.0
    %1375 = vmatprep.subr.mxu0 0.0
    %1376 = vmatpush1.msra.mxu0 0.0
    %1377 = vmatprep.subr.mxu0 0.0
    %1378 = vmatpush1.msra.mxu0 0.0
    %1379 = vmatprep.subr.mxu0 0.0
    %1380 = vmatpush1.msra.mxu0 0.0
    %1381 = vmatprep.subr.mxu0 0.0
    %1382 = vmatpush1.msra.mxu0 0.0
    %1383 = vmatprep.subr.mxu0 0.0
    %1384 = vmatpush1.msra.mxu0 0.0
    %1385 = vmatprep.subr.mxu0 0.0
    %1386 = vmatpush1.msra.mxu0 0.0
    %1387 = vmatprep.subr.mxu0 0.0
    %1388 = vmatpush1.msra.mxu0 0.0
    %1389 = vmatprep.subr.mxu0 0.0
    %1390 = vmatpush1.msra.mxu0 0.0
    %1391 = vmatprep.subr.mxu0 0.0
    %1392 = vmatpush1.msra.mxu0 0.0
    %1393 = vmatprep.subr.mxu0 0.0
    %1394 = vmatpush1.msra.mxu0 0.0
    %1395 = vmatprep.subr.mxu0 0.0
    %1396 = vmatpush1.msra.mxu0 0.0
    %1397 = vmatprep.subr.mxu0 0.0
    %1398 = vmatpush1.msra.mxu0 0.0
    %1399 = vmatprep.subr.mxu0 0.0
    %1400 = vmatpush1.msra.mxu0 0.0
    %1401 = vmatprep.subr.mxu0 0.0
    %1402 = vmatpush1.msra.mxu0 0.0
    %1403 = vmatprep.subr.mxu0 0.0
    %1404 = vmatpush1.msra.mxu0 0.0
    %1405 = vmatprep.subr.mxu0 0.0
    %1406 = vmatpush1.msra.mxu0 0.0
    %1407 = vmatprep.subr.mxu0 0.0
    %1408 = vmatpush1.msra.mxu0 0.0
    %1409 = vmatprep.subr.mxu0 0.0
    %1410 = vmatpush1.msra.mxu0 0.0
    %1411 = vmatprep.mubr.f32.mxu0 0.0
    %1412 = vmatmul.mubr.f32.gmra.mrb[0].mxu0 %v1345
    %v1413 = vpop.f32.mrb[0].mxu0
    %v1414 = vadd.f32 %v1342, %v1413
    %v1415 = vpop.f32.mrb[0].mxu0
    %1416 = vdwg.mxu0
    %1417 = vst [vmem:[#allocation6] sm:$0x3] %v1414
    // Predicated region
    $region46: #{neural_compiler_forward.1} parent=1 // pred_check
      _
    $region47: #{neural_compiler_forward.1} parent=1 // pred_check_branch
      %1419 = sbr.rel (0) target = $region49
    $region48: #{neural_compiler_forward.1} parent=1 // pred_region
      %s1421 = ssub.s32 512, 512
      %1422 = vsyncadd [#allocation3], %s1421
      %s1423 = sshll.u32 [#allocation2], 4
      %s1424 = int_to_ptr.vmem [resolvable:$true] %s1423
      %1429 = dma.vmem_to_hbm [thread:$0]  %s1424, 512, %s11, [#allocation3], 128, 128, 8
    $region49: #{neural_compiler_forward.1} parent=1 // pred_fallthru
      _
    // Predicated region
    $region50: #{neural_compiler_forward.1} parent=1 // pred_check
      _
    $region51: #{neural_compiler_forward.1} parent=1 // pred_check_branch
      %1431 = sbr.rel (0) target = $region53
    $region52: #{neural_compiler_forward.1} parent=1 // pred_region
      %s1433 = ssub.s32 256, 256
      %1434 = vsyncadd [#allocation5], %s1433
      %s1435 = sshll.u32 [#allocation4], 4
      %s1436 = int_to_ptr.vmem [resolvable:$true] %s1435
      %1441 = dma.vmem_to_hbm [thread:$0]  %s1436, 256, %s12, [#allocation5], 128, 128, 8
    $region53: #{neural_compiler_forward.1} parent=1 // pred_fallthru
      _
    // Predicated region
    $region54: #{neural_compiler_forward.1} parent=1 // pred_check
      _
    $region55: #{neural_compiler_forward.1} parent=1 // pred_check_branch
      %1443 = sbr.rel (0) target = $region57
    $region56: #{neural_compiler_forward.1} parent=1 // pred_region
      %s1445 = ssub.s32 32, 32
      %1446 = vsyncadd [#allocation5], %s1445
      %s1448 = sshll.u32 [#allocation6], 4
      %s1449 = int_to_ptr.vmem [resolvable:$true] %s1448
      %1451 = dma.vmem_to_hbm [thread:$0]  %s1449, 32, %s13, [#allocation5]
    $region57: #{neural_compiler_forward.1} parent=1 // pred_fallthru
      _
    // Predicated region
    $region58: #{neural_compiler_forward.1} parent=1 // pred_check
      _
    $region59: #{neural_compiler_forward.1} parent=1 // pred_check_branch
      %1453 = sbr.rel (0) target = $region61
    $region60: #{neural_compiler_forward.1} parent=1 // pred_region
      %1454 = dma.done [#allocation3], 512
    $region61: #{neural_compiler_forward.1} parent=1 // pred_fallthru
      _
    // Predicated region
    $region62: #{neural_compiler_forward.1} parent=1 // pred_check
      _
    $region63: #{neural_compiler_forward.1} parent=1 // pred_check_branch
      %1456 = sbr.rel (0) target = $region65
    $region64: #{neural_compiler_forward.1} parent=1 // pred_region
      %1457 = dma.done [#allocation5], 256
    $region65: #{neural_compiler_forward.1} parent=1 // pred_fallthru
      _
    // Predicated region
    $region66: #{neural_compiler_forward.1} parent=1 // pred_check
      _
    $region67: #{neural_compiler_forward.1} parent=1 // pred_check_branch
      %1459 = sbr.rel (0) target = $region69
    $region68: #{neural_compiler_forward.1} parent=1 // pred_region
      %1460 = dma.done [#allocation5], 32
    $region69: #{neural_compiler_forward.1} parent=1 // pred_fallthru
      _
    %1461 = vsyncpa [#allocation3], 1
    %1462 = vsyncpa [#allocation5], 1

</llo_original>
